<compile_context>
chip_gen: v5e
topology: v5e:2x2
jax: 0.10.0
libtpu: 0.0.40
codegen_flags: <defaults>
</compile_context>

<pallas_src>
import numpy as np
import jax
import jax.numpy as jnp
from jax import lax
from jax.experimental import pallas as pl
from jax.experimental.pallas import tpu as pltpu

SELU_ALPHA = 1.6732632423543772848170429916717
SELU_SCALE = 1.0507009873554804934193349852946

LANE = 128
SUBLANE = 8
VMEM_LIMIT_BYTES = 32 * 1024 * 1024   # explicit scoped-VMEM budget; safe on v5e/v6e/v7x


def _selu(x):
    # clamp the exp argument so the discarded positive branch never computes exp(big)
    return SELU_SCALE * jnp.where(
        x > 0, x, SELU_ALPHA * (jnp.exp(jnp.minimum(x, 0.0)) - 1.0))


def _sigmoid(x):
    # numerically stable, tanh-based (EUP tanh; no exp overflow for very negative gates)
    return 0.5 * (jnp.tanh(0.5 * x) + 1.0)


def _round_up(v, m):
    return (v + m - 1) // m * m


def make_kernel(T, Bt, D, Hg, GP, KPAD, inv_temp, n_il, unroll, mxu_dtype):
    """One batch tile of Bt rows per grid step; n_il independent LSTM chains interleaved."""
    Bs = Bt // n_il   # rows per interleaved chain (multiple of 8 -> sublane-aligned slices)

    def kernel(x_ref, wih_ref, whh_ref, whead_ref, bhead_ref, mask_ref, add_ref,
               out_ref, xwih_ref, xrep_ref):
        # ---- hoisted input projection: all T timesteps in one matmul ------------------
        # TODO(synk): for tiny D (<=8) a VPU broadcast-FMA formulation would avoid the MXU
        # fill latency entirely; kept on the MXU since it is off the recurrence's critical path.
        x_all = x_ref[...].reshape(T * Bt, D).astype(mxu_dtype)
        xwih_ref[...] = jnp.dot(
            x_all, wih_ref[...],
            preferred_element_type=jnp.float32).reshape(T, Bt, GP)

        whh = whh_ref[...]                                  # (Hg, GP), compact gate packing

        def advance(t, h, c, rows):
            gates = xwih_ref[t, rows] + jnp.dot(
                h.astype(mxu_dtype), whh,
                preferred_element_type=jnp.float32)         # (Bs, GP)
            # gate j occupies static lanes [j*Hg, (j+1)*Hg); elementwise math stays f32
            i = _sigmoid(gates[:, 0 * Hg:1 * Hg])
            f = _sigmoid(gates[:, 1 * Hg:2 * Hg])
            g = jnp.tanh(gates[:, 2 * Hg:3 * Hg])
            o = _sigmoid(gates[:, 3 * Hg:4 * Hg])
            c = f * c + i * g
            h = o * jnp.tanh(c)
            xrep_ref[t, rows] = jnp.clip(h, 0.0, 6.0)       # nn.ReLU6()
            return h, c

        def body(t, carry):
            # n_il independent sub-tiles advanced in one body: chain A's EUP/VPU activations
            # overlap chain B's h @ W_hh on the MXU, hiding the serial-recurrence latency.
            new = []
            for s in range(n_il):
                h, c = advance(t, carry[2 * s], carry[2 * s + 1], pl.ds(s * Bs, Bs))
                new += [h, c]
            return tuple(new)

        init = tuple(jnp.zeros((Bs, Hg), jnp.float32) for _ in range(2 * n_il))
        lax.fori_loop(0, T, body, init, unroll=unroll)

        # ---- fused heads: one (T*Bt, Hg) @ (Hg, KPAD) matmul, single lane-dense store --
        xrep_all = xrep_ref[...].reshape(T * Bt, Hg).astype(mxu_dtype)
        y = jnp.dot(xrep_all, whead_ref[...],
                    preferred_element_type=jnp.float32) + bhead_ref[...]   # (T*Bt, KPAD)
        out = jnp.where(mask_ref[...] > 0.5,          # SELU cols (shape|scale) vs gate cols
                        _selu(y) + add_ref[...],      # SELU(.) + shape/scale param
                        y * inv_temp)                 # gate logits / temp
        out_ref[...] = out.reshape(T, Bt, KPAD)

    return kernel


def _pack_params(params, D, H, k, Hg, GP, KPAD, mxu_dtype):
    """Compact gate packing (gate j -> lanes [j*Hg,(j+1)*Hg), GP=4*Hg a multiple of 128)
    plus the three head weights/biases/params fused into one lane-dense (Hg, KPAD) head.
    Padded columns/rows are zero, so padded hidden lanes stay exactly zero through the
    recurrence (sigmoid(0)*0 terms)."""
    wih = params["wih_t"]   # (D, 4H), PyTorch gate order [i, f, g, o]
    whh = params["whh_t"]   # (H, 4H)

    def pack(w, row_pad):
        blocks = [jnp.pad(w[:, j * H:(j + 1) * H], ((0, 0), (0, Hg - H))) for j in range(4)]
        w2 = jnp.concatenate(blocks, axis=1)                           # (rows, GP)
        return jnp.pad(w2, ((0, row_pad - w2.shape[0]), (0, 0))).astype(mxu_dtype)

    wih_p = pack(wih, D)                                               # (D, GP)
    whh_p = pack(whh, Hg)                                              # (Hg, GP)

    w_heads = jnp.zeros((Hg, KPAD), jnp.float32)
    w_heads = w_heads.at[:H, 0:k].set(params["wshape"])
    w_heads = w_heads.at[:H, k:2 * k].set(params["wscale"])
    w_heads = w_heads.at[:H, 2 * k:3 * k].set(params["wgate"])
    w_heads = w_heads.astype(mxu_dtype)

    b_heads = jnp.zeros((1, KPAD), jnp.float32)
    b_heads = b_heads.at[:, 0:k].set(params["bshape"])
    b_heads = b_heads.at[:, k:2 * k].set(params["bscale"])

    addend = jnp.zeros((1, KPAD), jnp.float32)
    addend = addend.at[:, 0:k].set(params["shape_p"])
    addend = addend.at[:, k:2 * k].set(params["scale_p"])

    selu_mask = jnp.zeros((1, KPAD), jnp.float32).at[:, 0:2 * k].set(1.0)
    return wih_p, whh_p, w_heads, b_heads, selu_mask, addend


def _choose_block_b(B, T, D, GP, Hg, KPAD, vmem_limit_bytes):
    """Largest batch tile that fits the VMEM budget (review: Bt is the single biggest lever)."""
    # f32 bytes per batch row resident in VMEM:
    #   xwih scratch T*GP + xrep scratch T*Hg + double-buffered x / out pipeline blocks.
    per_row = 4 * T * (GP + Hg) + 2 * 4 * T * (D + KPAD)
    weights = 4 * (D * GP + Hg * GP + Hg * KPAD + 3 * KPAD)            # single-buffered consts
    budget = int(0.75 * vmem_limit_bytes) - weights
    cap = max(SUBLANE, budget // max(per_row, 1) // SUBLANE * SUBLANE)
    bt = int(min(256, cap, _round_up(B, SUBLANE)))
    bt = max(SUBLANE, bt // SUBLANE * SUBLANE)
    # keep >= 2 grid steps when the batch allows it: feeds both v7x TensorCores
    # ("parallel" axis) and gives the input/output pipeline something to double-buffer.
    while B > SUBLANE and bt > SUBLANE and -(-B // bt) < 2:
        bt = max(SUBLANE, _round_up(bt // 2, SUBLANE))
    return bt


def drdp_pallas(x, params, k, hidden, temp, block_b=None, use_bf16=False):
    """x: (B, T, D) float32, NaNs already zeroed. Returns three (B*T, k) arrays."""
    B, T, D = x.shape
    H = hidden
    Hg = _round_up(H, 32)                 # 4*Hg is a multiple of 128 lanes (compact packing)
    GP = 4 * Hg
    KPAD = _round_up(3 * k, LANE)         # single lane-dense output stream

    if block_b is None:
        block_b = _choose_block_b(B, T, D, GP, Hg, KPAD, VMEM_LIMIT_BYTES)
    Bt = max(SUBLANE, _round_up(block_b, SUBLANE))
    Bpad = _round_up(B, Bt)
    n_il = 2 if (Bt >= 16 and Bt % 16 == 0) else 1     # sub-tile interleave in the recurrence
    unroll = True if T <= 16 else 4
    # bf16 only for MXU operands; elementwise/EUP path stays f32 (v5e has no bf16 VPU/EUP).
    mxu_dtype = jnp.bfloat16 if use_bf16 else jnp.float32

    # batch pad + time-major layout so per-timestep slabs are contiguous in VMEM
    x_p = jnp.pad(x, ((0, Bpad - B), (0, 0), (0, 0)))
    x_tm = jnp.transpose(x_p, (1, 0, 2))                               # (T, Bpad, D)

    wih_p, whh_p, w_heads, b_heads, selu_mask, addend = _pack_params(
        params, D, H, k, Hg, GP, KPAD, mxu_dtype)

    kernel = make_kernel(T, Bt, D, Hg, GP, KPAD, 1.0 / float(temp), n_il, unroll, mxu_dtype)

    def const_spec(shp):
        # constant index map across the grid -> single-buffer (no VMEM on a second copy)
        return pl.BlockSpec(shp, lambda b: (0, 0), pipeline_mode=pl.Buffered(1))

    # TODO(synk): for very long T, chunk the xwih/xrep scratch along time instead of sizing
    # it to the full sequence (the T*Bt*GP term dominates the VMEM budget).
    out_tm = pl.pallas_call(
        kernel,
        out_shape=jax.ShapeDtypeStruct((T, Bpad, KPAD), jnp.float32),
        grid_spec=pltpu.PrefetchScalarGridSpec(
            num_scalar_prefetch=0,
            grid=(Bpad // Bt,),
            in_specs=[
                pl.BlockSpec((T, Bt, D), lambda b: (0, b, 0)),         # x (time-major)
                const_spec((D, GP)),                                   # W_ih^T (packed gates)
                const_spec((Hg, GP)),                                  # W_hh^T (packed gates)
                const_spec((Hg, KPAD)),                                # fused head weights
                const_spec((1, KPAD)),                                 # fused head biases
                const_spec((1, KPAD)),                                 # SELU column mask
                const_spec((1, KPAD)),                                 # shape_p | scale_p addend
            ],
            out_specs=pl.BlockSpec((T, Bt, KPAD), lambda b: (0, b, 0)),
            scratch_shapes=[
                pltpu.VMEM((T, Bt, GP), jnp.float32),                  # hoisted x @ W_ih
                pltpu.VMEM((T, Bt, Hg), jnp.float32),                  # xrep (ReLU6(h)) buffer
            ],
        ),
        compiler_params=pltpu.CompilerParams(
            dimension_semantics=("parallel",),                         # batch axis feeds both TCs
            vmem_limit_bytes=VMEM_LIMIT_BYTES),
    )(x_tm, wih_p, whh_p, w_heads, b_heads, selu_mask, addend)

    # slice padded batch rows AND padded lanes before the transpose (cuts epilogue HBM ~14x)
    out = jnp.transpose(out_tm[:, :B, :3 * k], (1, 0, 2)).reshape(B * T, 3 * k)
    return out[:, 0:k], out[:, k:2 * k], out[:, 2 * k:3 * k]


def forward(x, params, k, hidden, temp, use_bf16=False, block_b=None):
    """Full DeepRecurrentDPTorch.forward semantics (risk='1')."""
    inputmask = ~jnp.isnan(x[:, :, 0]).reshape(-1)
    x = jnp.where(jnp.isnan(x), 0.0, x)
    shp, scl, gt = drdp_pallas(x, params, k, hidden, temp,
                               block_b=block_b, use_bf16=use_bf16)
    # Dynamic-shape boolean row filter (xrep = xrep[inputmask]) applied outside the kernel.
    shp = shp[inputmask]
    scl = scl[inputmask]
    gt = gt[inputmask]
    return shp, scl, gt


def reference_forward(x, params, k, H, temp):
    """Pure-JAX reference mirroring the torch forward."""
    inputmask = ~jnp.isnan(x[:, :, 0]).reshape(-1)
    x = jnp.where(jnp.isnan(x), 0.0, x)
    B, T, D = x.shape
    h = jnp.zeros((B, H), jnp.float32)
    c = jnp.zeros((B, H), jnp.float32)
    hs = []
    for t in range(T):
        gates = x[:, t, :] @ params["wih_t"] + h @ params["whh_t"]
        i = jax.nn.sigmoid(gates[:, :H])
        f = jax.nn.sigmoid(gates[:, H:2 * H])
        g = jnp.tanh(gates[:, 2 * H:3 * H])
        o = jax.nn.sigmoid(gates[:, 3 * H:])
        c = f * c + i * g
        h = o * jnp.tanh(c)
        hs.append(h)
    xrep = jnp.stack(hs, axis=1).reshape(B * T, H)
    xrep = xrep[inputmask]
    xrep = jnp.clip(xrep, 0.0, 6.0)
    shp = jax.nn.selu(xrep @ params["wshape"] + params["bshape"]) + params["shape_p"]
    scl = jax.nn.selu(xrep @ params["wscale"] + params["bscale"]) + params["scale_p"]
    gt = (xrep @ params["wgate"]) / temp
    return shp, scl, gt


def init_params(key, D, H, k):
    ks = jax.random.split(key, 7)
    u = lambda kk, shp: jax.random.uniform(kk, shp, jnp.float32, -0.1, 0.1)
    return {
        "wih_t": u(ks[0], (D, 4 * H)),     # LSTM weight_ih_l0^T, gate order [i,f,g,o]
        "whh_t": u(ks[1], (H, 4 * H)),     # LSTM weight_hh_l0^T
        "wshape": u(ks[2], (H, k)),        # shapeg['1'] Linear weight^T
        "bshape": u(ks[3], (1, k)),        # shapeg['1'] Linear bias
        "wscale": u(ks[4], (H, k)),        # scaleg['1'] Linear weight^T
        "bscale": u(ks[5], (1, k)),        # scaleg['1'] Linear bias
        # TODO(synk): self.gate is referenced in forward but never created by the given
        # _init_dsm_layers (and its call is missing `eta`); reconstructed here as the
        # standard DSM gate head: Linear(hidden, k, bias=False).
        "wgate": u(ks[6], (H, k)),
        "shape_p": -jnp.ones((1, k), jnp.float32),   # Weibull: nn.Parameter(-ones(k))
        "scale_p": -jnp.ones((1, k), jnp.float32),
    }


if __name__ == "__main__":
    TEMP = 1000.0
    key = jax.random.PRNGKey(0)
    kx, kp, kx2 = jax.random.split(key, 3)

    # ---- small shapes implied by the module (B=2, T=8, D=4, H=32, k=3) -----------------
    B, T, D, H, K = 2, 8, 4, 32, 3
    x = jax.random.normal(kx, (B, T, D), jnp.float32)          # no NaNs -> mask all True
    params = init_params(kp, D, H, K)

    shp, scl, gt = forward(x, params, K, H, TEMP)
    jax.block_until_ready((shp, scl, gt))

    shp_r, scl_r, gt_r = reference_forward(x, params, K, H, TEMP)
    np.testing.assert_allclose(np.asarray(shp), np.asarray(shp_r), rtol=2e-4, atol=2e-5)
    np.testing.assert_allclose(np.asarray(scl), np.asarray(scl_r), rtol=2e-4, atol=2e-5)
    np.testing.assert_allclose(np.asarray(gt), np.asarray(gt_r), rtol=2e-4, atol=1e-6)
    assert shp.shape == (B * T, K) and scl.shape == (B * T, K) and gt.shape == (B * T, K)

    # ---- larger batch: exercises the multi-step grid, 2-way sub-tile interleave and NaN
    #      row masking (semantics of the torch forward) ----------------------------------
    B2 = 64
    x2 = jax.random.normal(kx2, (B2, T, D), jnp.float32)
    x2 = x2.at[5, 6, :].set(jnp.nan)    # whole-row NaN  -> dropped by inputmask
    x2 = x2.at[10, 2, 0].set(jnp.nan)   # first-feature NaN -> dropped by inputmask
    shp2, scl2, gt2 = forward(x2, params, K, H, TEMP)
    jax.block_until_ready((shp2, scl2, gt2))
    shp2_r, scl2_r, gt2_r = reference_forward(x2, params, K, H, TEMP)
    np.testing.assert_allclose(np.asarray(shp2), np.asarray(shp2_r), rtol=2e-4, atol=2e-5)
    np.testing.assert_allclose(np.asarray(scl2), np.asarray(scl2_r), rtol=2e-4, atol=2e-5)
    np.testing.assert_allclose(np.asarray(gt2), np.asarray(gt2_r), rtol=2e-4, atol=1e-6)
    assert shp2.shape[0] == B2 * T - 2   # two rows dropped by the NaN mask

    # ---- bf16 MXU operands (v6e/v7x throughput + VMEM lever); looser tolerance ---------
    shp3, scl3, gt3 = forward(x2, params, K, H, TEMP, use_bf16=True)
    jax.block_until_ready((shp3, scl3, gt3))
    np.testing.assert_allclose(np.asarray(shp3), np.asarray(shp2_r), rtol=0.1, atol=0.1)
    np.testing.assert_allclose(np.asarray(scl3), np.asarray(scl2_r), rtol=0.1, atol=0.1)
    np.testing.assert_allclose(np.asarray(gt3), np.asarray(gt2_r), rtol=0.1, atol=1e-3)

    print("KERNEL_OK")
</pallas_src>

<mosaic_0001>
module attributes {stable_mosaic.version = 11 : i64} {
  func.func @kernel(%arg0: i32, %arg1: memref<8x8x4xf32, #tpu.memory_space<vmem>>, %arg2: memref<4x128xf32, #tpu.memory_space<vmem>>, %arg3: memref<32x128xf32, #tpu.memory_space<vmem>>, %arg4: memref<32x128xf32, #tpu.memory_space<vmem>>, %arg5: memref<1x128xf32, #tpu.memory_space<vmem>>, %arg6: memref<1x128xf32, #tpu.memory_space<vmem>>, %arg7: memref<1x128xf32, #tpu.memory_space<vmem>>, %arg8: memref<8x8x128xf32, #tpu.memory_space<vmem>>, %arg9: memref<8x8x128xf32, #tpu.memory_space<vmem>>, %arg10: memref<8x8x32xf32, #tpu.memory_space<vmem>>) attributes {dimension_semantics = [#tpu.dimension_semantics<parallel>], iteration_bounds = array<i64: 1>, scalar_prefetch = 0 : i64, scratch_operands = 2 : i64, tpu.core_type = #tpu.core_type<tc>, window_params = [{transform_indices = @transform_0, window_bounds = array<i64: 8, 8, 4>}, {pipeline_mode = #tpu.pipeline_mode<synchronous>, transform_indices = @transform_1, window_bounds = array<i64: 4, 128>}, {pipeline_mode = #tpu.pipeline_mode<synchronous>, transform_indices = @transform_2, window_bounds = array<i64: 32, 128>}, {pipeline_mode = #tpu.pipeline_mode<synchronous>, transform_indices = @transform_3, window_bounds = array<i64: 32, 128>}, {pipeline_mode = #tpu.pipeline_mode<synchronous>, transform_indices = @transform_4, window_bounds = array<i64: 1, 128>}, {pipeline_mode = #tpu.pipeline_mode<synchronous>, transform_indices = @transform_5, window_bounds = array<i64: 1, 128>}, {pipeline_mode = #tpu.pipeline_mode<synchronous>, transform_indices = @transform_6, window_bounds = array<i64: 1, 128>}, {transform_indices = @transform_7, window_bounds = array<i64: 8, 8, 128>}]} {
    %c0 = arith.constant 0 : index
    %c0_0 = arith.constant 0 : index
    %c0_1 = arith.constant 0 : index
    %0 = vector.load %arg1[%c0, %c0_0, %c0_1] : memref<8x8x4xf32, #tpu.memory_space<vmem>>, vector<8x8x4xf32>
    %1 = vector.shape_cast %0 : vector<8x8x4xf32> to vector<64x4xf32>
    %c0_2 = arith.constant 0 : index
    %c0_3 = arith.constant 0 : index
    %2 = vector.load %arg2[%c0_2, %c0_3] : memref<4x128xf32, #tpu.memory_space<vmem>>, vector<4x128xf32>
    %cst = arith.constant dense<0.000000e+00> : vector<64x128xf32>
    %3 = tpu.matmul %1, %2, %cst {dimension_numbers = #tpu.dot_dimension_numbers<[1], [0], [0], [1], [0, 0, 1, 1], [], []>} : vector<64x4xf32>, vector<4x128xf32>, vector<64x128xf32> -> vector<64x128xf32>
    %4 = vector.shape_cast %3 : vector<64x128xf32> to vector<8x8x128xf32>
    %c0_4 = arith.constant 0 : index
    %c0_5 = arith.constant 0 : index
    %c0_6 = arith.constant 0 : index
    %5 = vector.load %arg9[%c0_4, %c0_5, %c0_6] : memref<8x8x128xf32, #tpu.memory_space<vmem>>, vector<8x8x128xf32>
    tpu.vector_store %arg9[%c0_4, %c0_5, %c0_6], %4 {strides = array<i32>} : memref<8x8x128xf32, #tpu.memory_space<vmem>>, vector<8x8x128xf32>,
    %c0_7 = arith.constant 0 : index
    %c0_8 = arith.constant 0 : index
    %6 = vector.load %arg3[%c0_7, %c0_8] : memref<32x128xf32, #tpu.memory_space<vmem>>, vector<32x128xf32>
    %cst_9 = arith.constant 0.000000e+00 : f32
    %7 = vector.broadcast %cst_9 : f32 to vector<8x32xf32>
    %cst_10 = arith.constant 0.000000e+00 : f32
    %8 = vector.broadcast %cst_10 : f32 to vector<8x32xf32>
    %c0_i32 = arith.constant 0 : i32
    %9 = arith.index_cast %c0_i32 : i32 to index
    %c0_11 = arith.constant 0 : index
    %c0_12 = arith.constant 0 : index
    %10 = vector.load %arg9[%9, %c0_11, %c0_12] : memref<8x8x128xf32, #tpu.memory_space<vmem>>, vector<1x8x128xf32>
    %11 = vector.shape_cast %10 : vector<1x8x128xf32> to vector<8x128xf32>
    %cst_13 = arith.constant dense<0.000000e+00> : vector<8x128xf32>
    %12 = tpu.matmul %7, %6, %cst_13 {dimension_numbers = #tpu.dot_dimension_numbers<[1], [0], [0], [1], [0, 0, 1, 1], [], []>} : vector<8x32xf32>, vector<32x128xf32>, vector<8x128xf32> -> vector<8x128xf32>
    %13 = arith.addf %11, %12 : vector<8x128xf32>
    %14 = vector.extract_strided_slice %13 {offsets = [0, 0], sizes = [8, 32], strides = [1, 1]} : vector<8x128xf32> to vector<8x32xf32>
    %cst_14 = arith.constant 5.000000e-01 : f32
    %15 = vector.broadcast %cst_14 : f32 to vector<8x32xf32>
    %16 = arith.mulf %15, %14 : vector<8x32xf32>
    %17 = math.tanh %16 : vector<8x32xf32>
    %cst_15 = arith.constant 1.000000e+00 : f32
    %18 = vector.broadcast %cst_15 : f32 to vector<8x32xf32>
    %19 = arith.addf %17, %18 : vector<8x32xf32>
    %cst_16 = arith.constant 5.000000e-01 : f32
    %20 = vector.broadcast %cst_16 : f32 to vector<8x32xf32>
    %21 = arith.mulf %20, %19 : vector<8x32xf32>
    %22 = vector.extract_strided_slice %13 {offsets = [0, 32], sizes = [8, 32], strides = [1, 1]} : vector<8x128xf32> to vector<8x32xf32>
    %cst_17 = arith.constant 5.000000e-01 : f32
    %23 = vector.broadcast %cst_17 : f32 to vector<8x32xf32>
    %24 = arith.mulf %23, %22 : vector<8x32xf32>
    %25 = math.tanh %24 : vector<8x32xf32>
    %cst_18 = arith.constant 1.000000e+00 : f32
    %26 = vector.broadcast %cst_18 : f32 to vector<8x32xf32>
    %27 = arith.addf %25, %26 : vector<8x32xf32>
    %cst_19 = arith.constant 5.000000e-01 : f32
    %28 = vector.broadcast %cst_19 : f32 to vector<8x32xf32>
    %29 = arith.mulf %28, %27 : vector<8x32xf32>
    %30 = vector.extract_strided_slice %13 {offsets = [0, 64], sizes = [8, 32], strides = [1, 1]} : vector<8x128xf32> to vector<8x32xf32>
    %31 = math.tanh %30 : vector<8x32xf32>
    %32 = vector.extract_strided_slice %13 {offsets = [0, 96], sizes = [8, 32], strides = [1, 1]} : vector<8x128xf32> to vector<8x32xf32>
    %cst_20 = arith.constant 5.000000e-01 : f32
    %33 = vector.broadcast %cst_20 : f32 to vector<8x32xf32>
    %34 = arith.mulf %33, %32 : vector<8x32xf32>
    %35 = math.tanh %34 : vector<8x32xf32>
    %cst_21 = arith.constant 1.000000e+00 : f32
    %36 = vector.broadcast %cst_21 : f32 to vector<8x32xf32>
    %37 = arith.addf %35, %36 : vector<8x32xf32>
    %cst_22 = arith.constant 5.000000e-01 : f32
    %38 = vector.broadcast %cst_22 : f32 to vector<8x32xf32>
    %39 = arith.mulf %38, %37 : vector<8x32xf32>
    %40 = arith.mulf %29, %8 : vector<8x32xf32>
    %41 = arith.mulf %21, %31 : vector<8x32xf32>
    %42 = arith.addf %40, %41 : vector<8x32xf32>
    %43 = math.tanh %42 : vector<8x32xf32>
    %44 = arith.mulf %39, %43 : vector<8x32xf32>
    %cst_23 = arith.constant 0.000000e+00 : f32
    %cst_24 = arith.constant 6.000000e+00 : f32
    %45 = vector.broadcast %cst_23 : f32 to vector<8x32xf32>
    %46 = arith.maximumf %45, %44 : vector<8x32xf32>
    %47 = vector.broadcast %cst_24 : f32 to vector<8x32xf32>
    %48 = arith.minimumf %47, %46 : vector<8x32xf32>
    %49 = arith.index_cast %c0_i32 : i32 to index
    %c0_25 = arith.constant 0 : index
    %c0_26 = arith.constant 0 : index
    %50 = vector.load %arg10[%49, %c0_25, %c0_26] : memref<8x8x32xf32, #tpu.memory_space<vmem>>, vector<1x8x32xf32>
    %51 = vector.shape_cast %50 : vector<1x8x32xf32> to vector<8x32xf32>
    %52 = vector.shape_cast %48 : vector<8x32xf32> to vector<1x8x32xf32>
    tpu.vector_store %arg10[%49, %c0_25, %c0_26], %52 {strides = array<i32>} : memref<8x8x32xf32, #tpu.memory_space<vmem>>, vector<1x8x32xf32>,
    %c1_i32 = arith.constant 1 : i32
    %53 = arith.index_cast %c1_i32 : i32 to index
    %c0_27 = arith.constant 0 : index
    %c0_28 = arith.constant 0 : index
    %54 = vector.load %arg9[%53, %c0_27, %c0_28] : memref<8x8x128xf32, #tpu.memory_space<vmem>>, vector<1x8x128xf32>
    %55 = vector.shape_cast %54 : vector<1x8x128xf32> to vector<8x128xf32>
    %cst_29 = arith.constant dense<0.000000e+00> : vector<8x128xf32>
    %56 = tpu.matmul %44, %6, %cst_29 {dimension_numbers = #tpu.dot_dimension_numbers<[1], [0], [0], [1], [0, 0, 1, 1], [], []>} : vector<8x32xf32>, vector<32x128xf32>, vector<8x128xf32> -> vector<8x128xf32>
    %57 = arith.addf %55, %56 : vector<8x128xf32>
    %58 = vector.extract_strided_slice %57 {offsets = [0, 0], sizes = [8, 32], strides = [1, 1]} : vector<8x128xf32> to vector<8x32xf32>
    %cst_30 = arith.constant 5.000000e-01 : f32
    %59 = vector.broadcast %cst_30 : f32 to vector<8x32xf32>
    %60 = arith.mulf %59, %58 : vector<8x32xf32>
    %61 = math.tanh %60 : vector<8x32xf32>
    %cst_31 = arith.constant 1.000000e+00 : f32
    %62 = vector.broadcast %cst_31 : f32 to vector<8x32xf32>
    %63 = arith.addf %61, %62 : vector<8x32xf32>
    %cst_32 = arith.constant 5.000000e-01 : f32
    %64 = vector.broadcast %cst_32 : f32 to vector<8x32xf32>
    %65 = arith.mulf %64, %63 : vector<8x32xf32>
    %66 = vector.extract_strided_slice %57 {offsets = [0, 32], sizes = [8, 32], strides = [1, 1]} : vector<8x128xf32> to vector<8x32xf32>
    %cst_33 = arith.constant 5.000000e-01 : f32
    %67 = vector.broadcast %cst_33 : f32 to vector<8x32xf32>
    %68 = arith.mulf %67, %66 : vector<8x32xf32>
    %69 = math.tanh %68 : vector<8x32xf32>
    %cst_34 = arith.constant 1.000000e+00 : f32
    %70 = vector.broadcast %cst_34 : f32 to vector<8x32xf32>
    %71 = arith.addf %69, %70 : vector<8x32xf32>
    %cst_35 = arith.constant 5.000000e-01 : f32
    %72 = vector.broadcast %cst_35 : f32 to vector<8x32xf32>
    %73 = arith.mulf %72, %71 : vector<8x32xf32>
    %74 = vector.extract_strided_slice %57 {offsets = [0, 64], sizes = [8, 32], strides = [1, 1]} : vector<8x128xf32> to vector<8x32xf32>
    %75 = math.tanh %74 : vector<8x32xf32>
    %76 = vector.extract_strided_slice %57 {offsets = [0, 96], sizes = [8, 32], strides = [1, 1]} : vector<8x128xf32> to vector<8x32xf32>
    %cst_36 = arith.constant 5.000000e-01 : f32
    %77 = vector.broadcast %cst_36 : f32 to vector<8x32xf32>
    %78 = arith.mulf %77, %76 : vector<8x32xf32>
    %79 = math.tanh %78 : vector<8x32xf32>
    %cst_37 = arith.constant 1.000000e+00 : f32
    %80 = vector.broadcast %cst_37 : f32 to vector<8x32xf32>
    %81 = arith.addf %79, %80 : vector<8x32xf32>
    %cst_38 = arith.constant 5.000000e-01 : f32
    %82 = vector.broadcast %cst_38 : f32 to vector<8x32xf32>
    %83 = arith.mulf %82, %81 : vector<8x32xf32>
    %84 = arith.mulf %73, %42 : vector<8x32xf32>
    %85 = arith.mulf %65, %75 : vector<8x32xf32>
    %86 = arith.addf %84, %85 : vector<8x32xf32>
    %87 = math.tanh %86 : vector<8x32xf32>
    %88 = arith.mulf %83, %87 : vector<8x32xf32>
    %cst_39 = arith.constant 0.000000e+00 : f32
    %cst_40 = arith.constant 6.000000e+00 : f32
    %89 = vector.broadcast %cst_39 : f32 to vector<8x32xf32>
    %90 = arith.maximumf %89, %88 : vector<8x32xf32>
    %91 = vector.broadcast %cst_40 : f32 to vector<8x32xf32>
    %92 = arith.minimumf %91, %90 : vector<8x32xf32>
    %93 = arith.index_cast %c1_i32 : i32 to index
    %c0_41 = arith.constant 0 : index
    %c0_42 = arith.constant 0 : index
    %94 = vector.load %arg10[%93, %c0_41, %c0_42] : memref<8x8x32xf32, #tpu.memory_space<vmem>>, vector<1x8x32xf32>
    %95 = vector.shape_cast %94 : vector<1x8x32xf32> to vector<8x32xf32>
    %96 = vector.shape_cast %92 : vector<8x32xf32> to vector<1x8x32xf32>
    tpu.vector_store %arg10[%93, %c0_41, %c0_42], %96 {strides = array<i32>} : memref<8x8x32xf32, #tpu.memory_space<vmem>>, vector<1x8x32xf32>,
    %c2_i32 = arith.constant 2 : i32
    %97 = arith.index_cast %c2_i32 : i32 to index
    %c0_43 = arith.constant 0 : index
    %c0_44 = arith.constant 0 : index
    %98 = vector.load %arg9[%97, %c0_43, %c0_44] : memref<8x8x128xf32, #tpu.memory_space<vmem>>, vector<1x8x128xf32>
    %99 = vector.shape_cast %98 : vector<1x8x128xf32> to vector<8x128xf32>
    %cst_45 = arith.constant dense<0.000000e+00> : vector<8x128xf32>
    %100 = tpu.matmul %88, %6, %cst_45 {dimension_numbers = #tpu.dot_dimension_numbers<[1], [0], [0], [1], [0, 0, 1, 1], [], []>} : vector<8x32xf32>, vector<32x128xf32>, vector<8x128xf32> -> vector<8x128xf32>
    %101 = arith.addf %99, %100 : vector<8x128xf32>
    %102 = vector.extract_strided_slice %101 {offsets = [0, 0], sizes = [8, 32], strides = [1, 1]} : vector<8x128xf32> to vector<8x32xf32>
    %cst_46 = arith.constant 5.000000e-01 : f32
    %103 = vector.broadcast %cst_46 : f32 to vector<8x32xf32>
    %104 = arith.mulf %103, %102 : vector<8x32xf32>
    %105 = math.tanh %104 : vector<8x32xf32>
    %cst_47 = arith.constant 1.000000e+00 : f32
    %106 = vector.broadcast %cst_47 : f32 to vector<8x32xf32>
    %107 = arith.addf %105, %106 : vector<8x32xf32>
    %cst_48 = arith.constant 5.000000e-01 : f32
    %108 = vector.broadcast %cst_48 : f32 to vector<8x32xf32>
    %109 = arith.mulf %108, %107 : vector<8x32xf32>
    %110 = vector.extract_strided_slice %101 {offsets = [0, 32], sizes = [8, 32], strides = [1, 1]} : vector<8x128xf32> to vector<8x32xf32>
    %cst_49 = arith.constant 5.000000e-01 : f32
    %111 = vector.broadcast %cst_49 : f32 to vector<8x32xf32>
    %112 = arith.mulf %111, %110 : vector<8x32xf32>
    %113 = math.tanh %112 : vector<8x32xf32>
    %cst_50 = arith.constant 1.000000e+00 : f32
    %114 = vector.broadcast %cst_50 : f32 to vector<8x32xf32>
    %115 = arith.addf %113, %114 : vector<8x32xf32>
    %cst_51 = arith.constant 5.000000e-01 : f32
    %116 = vector.broadcast %cst_51 : f32 to vector<8x32xf32>
    %117 = arith.mulf %116, %115 : vector<8x32xf32>
    %118 = vector.extract_strided_slice %101 {offsets = [0, 64], sizes = [8, 32], strides = [1, 1]} : vector<8x128xf32> to vector<8x32xf32>
    %119 = math.tanh %118 : vector<8x32xf32>
    %120 = vector.extract_strided_slice %101 {offsets = [0, 96], sizes = [8, 32], strides = [1, 1]} : vector<8x128xf32> to vector<8x32xf32>
    %cst_52 = arith.constant 5.000000e-01 : f32
    %121 = vector.broadcast %cst_52 : f32 to vector<8x32xf32>
    %122 = arith.mulf %121, %120 : vector<8x32xf32>
    %123 = math.tanh %122 : vector<8x32xf32>
    %cst_53 = arith.constant 1.000000e+00 : f32
    %124 = vector.broadcast %cst_53 : f32 to vector<8x32xf32>
    %125 = arith.addf %123, %124 : vector<8x32xf32>
    %cst_54 = arith.constant 5.000000e-01 : f32
    %126 = vector.broadcast %cst_54 : f32 to vector<8x32xf32>
    %127 = arith.mulf %126, %125 : vector<8x32xf32>
    %128 = arith.mulf %117, %86 : vector<8x32xf32>
    %129 = arith.mulf %109, %119 : vector<8x32xf32>
    %130 = arith.addf %128, %129 : vector<8x32xf32>
    %131 = math.tanh %130 : vector<8x32xf32>
    %132 = arith.mulf %127, %131 : vector<8x32xf32>
    %cst_55 = arith.constant 0.000000e+00 : f32
    %cst_56 = arith.constant 6.000000e+00 : f32
    %133 = vector.broadcast %cst_55 : f32 to vector<8x32xf32>
    %134 = arith.maximumf %133, %132 : vector<8x32xf32>
    %135 = vector.broadcast %cst_56 : f32 to vector<8x32xf32>
    %136 = arith.minimumf %135, %134 : vector<8x32xf32>
    %137 = arith.index_cast %c2_i32 : i32 to index
    %c0_57 = arith.constant 0 : index
    %c0_58 = arith.constant 0 : index
    %138 = vector.load %arg10[%137, %c0_57, %c0_58] : memref<8x8x32xf32, #tpu.memory_space<vmem>>, vector<1x8x32xf32>
    %139 = vector.shape_cast %138 : vector<1x8x32xf32> to vector<8x32xf32>
    %140 = vector.shape_cast %136 : vector<8x32xf32> to vector<1x8x32xf32>
    tpu.vector_store %arg10[%137, %c0_57, %c0_58], %140 {strides = array<i32>} : memref<8x8x32xf32, #tpu.memory_space<vmem>>, vector<1x8x32xf32>,
    %c3_i32 = arith.constant 3 : i32
    %141 = arith.index_cast %c3_i32 : i32 to index
    %c0_59 = arith.constant 0 : index
    %c0_60 = arith.constant 0 : index
    %142 = vector.load %arg9[%141, %c0_59, %c0_60] : memref<8x8x128xf32, #tpu.memory_space<vmem>>, vector<1x8x128xf32>
    %143 = vector.shape_cast %142 : vector<1x8x128xf32> to vector<8x128xf32>
    %cst_61 = arith.constant dense<0.000000e+00> : vector<8x128xf32>
    %144 = tpu.matmul %132, %6, %cst_61 {dimension_numbers = #tpu.dot_dimension_numbers<[1], [0], [0], [1], [0, 0, 1, 1], [], []>} : vector<8x32xf32>, vector<32x128xf32>, vector<8x128xf32> -> vector<8x128xf32>
    %145 = arith.addf %143, %144 : vector<8x128xf32>
    %146 = vector.extract_strided_slice %145 {offsets = [0, 0], sizes = [8, 32], strides = [1, 1]} : vector<8x128xf32> to vector<8x32xf32>
    %cst_62 = arith.constant 5.000000e-01 : f32
    %147 = vector.broadcast %cst_62 : f32 to vector<8x32xf32>
    %148 = arith.mulf %147, %146 : vector<8x32xf32>
    %149 = math.tanh %148 : vector<8x32xf32>
    %cst_63 = arith.constant 1.000000e+00 : f32
    %150 = vector.broadcast %cst_63 : f32 to vector<8x32xf32>
    %151 = arith.addf %149, %150 : vector<8x32xf32>
    %cst_64 = arith.constant 5.000000e-01 : f32
    %152 = vector.broadcast %cst_64 : f32 to vector<8x32xf32>
    %153 = arith.mulf %152, %151 : vector<8x32xf32>
    %154 = vector.extract_strided_slice %145 {offsets = [0, 32], sizes = [8, 32], strides = [1, 1]} : vector<8x128xf32> to vector<8x32xf32>
    %cst_65 = arith.constant 5.000000e-01 : f32
    %155 = vector.broadcast %cst_65 : f32 to vector<8x32xf32>
    %156 = arith.mulf %155, %154 : vector<8x32xf32>
    %157 = math.tanh %156 : vector<8x32xf32>
    %cst_66 = arith.constant 1.000000e+00 : f32
    %158 = vector.broadcast %cst_66 : f32 to vector<8x32xf32>
    %159 = arith.addf %157, %158 : vector<8x32xf32>
    %cst_67 = arith.constant 5.000000e-01 : f32
    %160 = vector.broadcast %cst_67 : f32 to vector<8x32xf32>
    %161 = arith.mulf %160, %159 : vector<8x32xf32>
    %162 = vector.extract_strided_slice %145 {offsets = [0, 64], sizes = [8, 32], strides = [1, 1]} : vector<8x128xf32> to vector<8x32xf32>
    %163 = math.tanh %162 : vector<8x32xf32>
    %164 = vector.extract_strided_slice %145 {offsets = [0, 96], sizes = [8, 32], strides = [1, 1]} : vector<8x128xf32> to vector<8x32xf32>
    %cst_68 = arith.constant 5.000000e-01 : f32
    %165 = vector.broadcast %cst_68 : f32 to vector<8x32xf32>
    %166 = arith.mulf %165, %164 : vector<8x32xf32>
    %167 = math.tanh %166 : vector<8x32xf32>
    %cst_69 = arith.constant 1.000000e+00 : f32
    %168 = vector.broadcast %cst_69 : f32 to vector<8x32xf32>
    %169 = arith.addf %167, %168 : vector<8x32xf32>
    %cst_70 = arith.constant 5.000000e-01 : f32
    %170 = vector.broadcast %cst_70 : f32 to vector<8x32xf32>
    %171 = arith.mulf %170, %169 : vector<8x32xf32>
    %172 = arith.mulf %161, %130 : vector<8x32xf32>
    %173 = arith.mulf %153, %163 : vector<8x32xf32>
    %174 = arith.addf %172, %173 : vector<8x32xf32>
    %175 = math.tanh %174 : vector<8x32xf32>
    %176 = arith.mulf %171, %175 : vector<8x32xf32>
    %cst_71 = arith.constant 0.000000e+00 : f32
    %cst_72 = arith.constant 6.000000e+00 : f32
    %177 = vector.broadcast %cst_71 : f32 to vector<8x32xf32>
    %178 = arith.maximumf %177, %176 : vector<8x32xf32>
    %179 = vector.broadcast %cst_72 : f32 to vector<8x32xf32>
    %180 = arith.minimumf %179, %178 : vector<8x32xf32>
    %181 = arith.index_cast %c3_i32 : i32 to index
    %c0_73 = arith.constant 0 : index
    %c0_74 = arith.constant 0 : index
    %182 = vector.load %arg10[%181, %c0_73, %c0_74] : memref<8x8x32xf32, #tpu.memory_space<vmem>>, vector<1x8x32xf32>
    %183 = vector.shape_cast %182 : vector<1x8x32xf32> to vector<8x32xf32>
    %184 = vector.shape_cast %180 : vector<8x32xf32> to vector<1x8x32xf32>
    tpu.vector_store %arg10[%181, %c0_73, %c0_74], %184 {strides = array<i32>} : memref<8x8x32xf32, #tpu.memory_space<vmem>>, vector<1x8x32xf32>,
    %c4_i32 = arith.constant 4 : i32
    %185 = arith.index_cast %c4_i32 : i32 to index
    %c0_75 = arith.constant 0 : index
    %c0_76 = arith.constant 0 : index
    %186 = vector.load %arg9[%185, %c0_75, %c0_76] : memref<8x8x128xf32, #tpu.memory_space<vmem>>, vector<1x8x128xf32>
    %187 = vector.shape_cast %186 : vector<1x8x128xf32> to vector<8x128xf32>
    %cst_77 = arith.constant dense<0.000000e+00> : vector<8x128xf32>
    %188 = tpu.matmul %176, %6, %cst_77 {dimension_numbers = #tpu.dot_dimension_numbers<[1], [0], [0], [1], [0, 0, 1, 1], [], []>} : vector<8x32xf32>, vector<32x128xf32>, vector<8x128xf32> -> vector<8x128xf32>
    %189 = arith.addf %187, %188 : vector<8x128xf32>
    %190 = vector.extract_strided_slice %189 {offsets = [0, 0], sizes = [8, 32], strides = [1, 1]} : vector<8x128xf32> to vector<8x32xf32>
    %cst_78 = arith.constant 5.000000e-01 : f32
    %191 = vector.broadcast %cst_78 : f32 to vector<8x32xf32>
    %192 = arith.mulf %191, %190 : vector<8x32xf32>
    %193 = math.tanh %192 : vector<8x32xf32>
    %cst_79 = arith.constant 1.000000e+00 : f32
    %194 = vector.broadcast %cst_79 : f32 to vector<8x32xf32>
    %195 = arith.addf %193, %194 : vector<8x32xf32>
    %cst_80 = arith.constant 5.000000e-01 : f32
    %196 = vector.broadcast %cst_80 : f32 to vector<8x32xf32>
    %197 = arith.mulf %196, %195 : vector<8x32xf32>
    %198 = vector.extract_strided_slice %189 {offsets = [0, 32], sizes = [8, 32], strides = [1, 1]} : vector<8x128xf32> to vector<8x32xf32>
    %cst_81 = arith.constant 5.000000e-01 : f32
    %199 = vector.broadcast %cst_81 : f32 to vector<8x32xf32>
    %200 = arith.mulf %199, %198 : vector<8x32xf32>
    %201 = math.tanh %200 : vector<8x32xf32>
    %cst_82 = arith.constant 1.000000e+00 : f32
    %202 = vector.broadcast %cst_82 : f32 to vector<8x32xf32>
    %203 = arith.addf %201, %202 : vector<8x32xf32>
    %cst_83 = arith.constant 5.000000e-01 : f32
    %204 = vector.broadcast %cst_83 : f32 to vector<8x32xf32>
    %205 = arith.mulf %204, %203 : vector<8x32xf32>
    %206 = vector.extract_strided_slice %189 {offsets = [0, 64], sizes = [8, 32], strides = [1, 1]} : vector<8x128xf32> to vector<8x32xf32>
    %207 = math.tanh %206 : vector<8x32xf32>
    %208 = vector.extract_strided_slice %189 {offsets = [0, 96], sizes = [8, 32], strides = [1, 1]} : vector<8x128xf32> to vector<8x32xf32>
    %cst_84 = arith.constant 5.000000e-01 : f32
    %209 = vector.broadcast %cst_84 : f32 to vector<8x32xf32>
    %210 = arith.mulf %209, %208 : vector<8x32xf32>
    %211 = math.tanh %210 : vector<8x32xf32>
    %cst_85 = arith.constant 1.000000e+00 : f32
    %212 = vector.broadcast %cst_85 : f32 to vector<8x32xf32>
    %213 = arith.addf %211, %212 : vector<8x32xf32>
    %cst_86 = arith.constant 5.000000e-01 : f32
    %214 = vector.broadcast %cst_86 : f32 to vector<8x32xf32>
    %215 = arith.mulf %214, %213 : vector<8x32xf32>
    %216 = arith.mulf %205, %174 : vector<8x32xf32>
    %217 = arith.mulf %197, %207 : vector<8x32xf32>
    %218 = arith.addf %216, %217 : vector<8x32xf32>
    %219 = math.tanh %218 : vector<8x32xf32>
    %220 = arith.mulf %215, %219 : vector<8x32xf32>
    %cst_87 = arith.constant 0.000000e+00 : f32
    %cst_88 = arith.constant 6.000000e+00 : f32
    %221 = vector.broadcast %cst_87 : f32 to vector<8x32xf32>
    %222 = arith.maximumf %221, %220 : vector<8x32xf32>
    %223 = vector.broadcast %cst_88 : f32 to vector<8x32xf32>
    %224 = arith.minimumf %223, %222 : vector<8x32xf32>
    %225 = arith.index_cast %c4_i32 : i32 to index
    %c0_89 = arith.constant 0 : index
    %c0_90 = arith.constant 0 : index
    %226 = vector.load %arg10[%225, %c0_89, %c0_90] : memref<8x8x32xf32, #tpu.memory_space<vmem>>, vector<1x8x32xf32>
    %227 = vector.shape_cast %226 : vector<1x8x32xf32> to vector<8x32xf32>
    %228 = vector.shape_cast %224 : vector<8x32xf32> to vector<1x8x32xf32>
    tpu.vector_store %arg10[%225, %c0_89, %c0_90], %228 {strides = array<i32>} : memref<8x8x32xf32, #tpu.memory_space<vmem>>, vector<1x8x32xf32>,
    %c5_i32 = arith.constant 5 : i32
    %229 = arith.index_cast %c5_i32 : i32 to index
    %c0_91 = arith.constant 0 : index
    %c0_92 = arith.constant 0 : index
    %230 = vector.load %arg9[%229, %c0_91, %c0_92] : memref<8x8x128xf32, #tpu.memory_space<vmem>>, vector<1x8x128xf32>
    %231 = vector.shape_cast %230 : vector<1x8x128xf32> to vector<8x128xf32>
    %cst_93 = arith.constant dense<0.000000e+00> : vector<8x128xf32>
    %232 = tpu.matmul %220, %6, %cst_93 {dimension_numbers = #tpu.dot_dimension_numbers<[1], [0], [0], [1], [0, 0, 1, 1], [], []>} : vector<8x32xf32>, vector<32x128xf32>, vector<8x128xf32> -> vector<8x128xf32>
    %233 = arith.addf %231, %232 : vector<8x128xf32>
    %234 = vector.extract_strided_slice %233 {offsets = [0, 0], sizes = [8, 32], strides = [1, 1]} : vector<8x128xf32> to vector<8x32xf32>
    %cst_94 = arith.constant 5.000000e-01 : f32
    %235 = vector.broadcast %cst_94 : f32 to vector<8x32xf32>
    %236 = arith.mulf %235, %234 : vector<8x32xf32>
    %237 = math.tanh %236 : vector<8x32xf32>
    %cst_95 = arith.constant 1.000000e+00 : f32
    %238 = vector.broadcast %cst_95 : f32 to vector<8x32xf32>
    %239 = arith.addf %237, %238 : vector<8x32xf32>
    %cst_96 = arith.constant 5.000000e-01 : f32
    %240 = vector.broadcast %cst_96 : f32 to vector<8x32xf32>
    %241 = arith.mulf %240, %239 : vector<8x32xf32>
    %242 = vector.extract_strided_slice %233 {offsets = [0, 32], sizes = [8, 32], strides = [1, 1]} : vector<8x128xf32> to vector<8x32xf32>
    %cst_97 = arith.constant 5.000000e-01 : f32
    %243 = vector.broadcast %cst_97 : f32 to vector<8x32xf32>
    %244 = arith.mulf %243, %242 : vector<8x32xf32>
    %245 = math.tanh %244 : vector<8x32xf32>
    %cst_98 = arith.constant 1.000000e+00 : f32
    %246 = vector.broadcast %cst_98 : f32 to vector<8x32xf32>
    %247 = arith.addf %245, %246 : vector<8x32xf32>
    %cst_99 = arith.constant 5.000000e-01 : f32
    %248 = vector.broadcast %cst_99 : f32 to vector<8x32xf32>
    %249 = arith.mulf %248, %247 : vector<8x32xf32>
    %250 = vector.extract_strided_slice %233 {offsets = [0, 64], sizes = [8, 32], strides = [1, 1]} : vector<8x128xf32> to vector<8x32xf32>
    %251 = math.tanh %250 : vector<8x32xf32>
    %252 = vector.extract_strided_slice %233 {offsets = [0, 96], sizes = [8, 32], strides = [1, 1]} : vector<8x128xf32> to vector<8x32xf32>
    %cst_100 = arith.constant 5.000000e-01 : f32
    %253 = vector.broadcast %cst_100 : f32 to vector<8x32xf32>
    %254 = arith.mulf %253, %252 : vector<8x32xf32>
    %255 = math.tanh %254 : vector<8x32xf32>
    %cst_101 = arith.constant 1.000000e+00 : f32
    %256 = vector.broadcast %cst_101 : f32 to vector<8x32xf32>
    %257 = arith.addf %255, %256 : vector<8x32xf32>
    %cst_102 = arith.constant 5.000000e-01 : f32
    %258 = vector.broadcast %cst_102 : f32 to vector<8x32xf32>
    %259 = arith.mulf %258, %257 : vector<8x32xf32>
    %260 = arith.mulf %249, %218 : vector<8x32xf32>
    %261 = arith.mulf %241, %251 : vector<8x32xf32>
    %262 = arith.addf %260, %261 : vector<8x32xf32>
    %263 = math.tanh %262 : vector<8x32xf32>
    %264 = arith.mulf %259, %263 : vector<8x32xf32>
    %cst_103 = arith.constant 0.000000e+00 : f32
    %cst_104 = arith.constant 6.000000e+00 : f32
    %265 = vector.broadcast %cst_103 : f32 to vector<8x32xf32>
    %266 = arith.maximumf %265, %264 : vector<8x32xf32>
    %267 = vector.broadcast %cst_104 : f32 to vector<8x32xf32>
    %268 = arith.minimumf %267, %266 : vector<8x32xf32>
    %269 = arith.index_cast %c5_i32 : i32 to index
    %c0_105 = arith.constant 0 : index
    %c0_106 = arith.constant 0 : index
    %270 = vector.load %arg10[%269, %c0_105, %c0_106] : memref<8x8x32xf32, #tpu.memory_space<vmem>>, vector<1x8x32xf32>
    %271 = vector.shape_cast %270 : vector<1x8x32xf32> to vector<8x32xf32>
    %272 = vector.shape_cast %268 : vector<8x32xf32> to vector<1x8x32xf32>
    tpu.vector_store %arg10[%269, %c0_105, %c0_106], %272 {strides = array<i32>} : memref<8x8x32xf32, #tpu.memory_space<vmem>>, vector<1x8x32xf32>,
    %c6_i32 = arith.constant 6 : i32
    %273 = arith.index_cast %c6_i32 : i32 to index
    %c0_107 = arith.constant 0 : index
    %c0_108 = arith.constant 0 : index
    %274 = vector.load %arg9[%273, %c0_107, %c0_108] : memref<8x8x128xf32, #tpu.memory_space<vmem>>, vector<1x8x128xf32>
    %275 = vector.shape_cast %274 : vector<1x8x128xf32> to vector<8x128xf32>
    %cst_109 = arith.constant dense<0.000000e+00> : vector<8x128xf32>
    %276 = tpu.matmul %264, %6, %cst_109 {dimension_numbers = #tpu.dot_dimension_numbers<[1], [0], [0], [1], [0, 0, 1, 1], [], []>} : vector<8x32xf32>, vector<32x128xf32>, vector<8x128xf32> -> vector<8x128xf32>
    %277 = arith.addf %275, %276 : vector<8x128xf32>
    %278 = vector.extract_strided_slice %277 {offsets = [0, 0], sizes = [8, 32], strides = [1, 1]} : vector<8x128xf32> to vector<8x32xf32>
    %cst_110 = arith.constant 5.000000e-01 : f32
    %279 = vector.broadcast %cst_110 : f32 to vector<8x32xf32>
    %280 = arith.mulf %279, %278 : vector<8x32xf32>
    %281 = math.tanh %280 : vector<8x32xf32>
    %cst_111 = arith.constant 1.000000e+00 : f32
    %282 = vector.broadcast %cst_111 : f32 to vector<8x32xf32>
    %283 = arith.addf %281, %282 : vector<8x32xf32>
    %cst_112 = arith.constant 5.000000e-01 : f32
    %284 = vector.broadcast %cst_112 : f32 to vector<8x32xf32>
    %285 = arith.mulf %284, %283 : vector<8x32xf32>
    %286 = vector.extract_strided_slice %277 {offsets = [0, 32], sizes = [8, 32], strides = [1, 1]} : vector<8x128xf32> to vector<8x32xf32>
    %cst_113 = arith.constant 5.000000e-01 : f32
    %287 = vector.broadcast %cst_113 : f32 to vector<8x32xf32>
    %288 = arith.mulf %287, %286 : vector<8x32xf32>
    %289 = math.tanh %288 : vector<8x32xf32>
    %cst_114 = arith.constant 1.000000e+00 : f32
    %290 = vector.broadcast %cst_114 : f32 to vector<8x32xf32>
    %291 = arith.addf %289, %290 : vector<8x32xf32>
    %cst_115 = arith.constant 5.000000e-01 : f32
    %292 = vector.broadcast %cst_115 : f32 to vector<8x32xf32>
    %293 = arith.mulf %292, %291 : vector<8x32xf32>
    %294 = vector.extract_strided_slice %277 {offsets = [0, 64], sizes = [8, 32], strides = [1, 1]} : vector<8x128xf32> to vector<8x32xf32>
    %295 = math.tanh %294 : vector<8x32xf32>
    %296 = vector.extract_strided_slice %277 {offsets = [0, 96], sizes = [8, 32], strides = [1, 1]} : vector<8x128xf32> to vector<8x32xf32>
    %cst_116 = arith.constant 5.000000e-01 : f32
    %297 = vector.broadcast %cst_116 : f32 to vector<8x32xf32>
    %298 = arith.mulf %297, %296 : vector<8x32xf32>
    %299 = math.tanh %298 : vector<8x32xf32>
    %cst_117 = arith.constant 1.000000e+00 : f32
    %300 = vector.broadcast %cst_117 : f32 to vector<8x32xf32>
    %301 = arith.addf %299, %300 : vector<8x32xf32>
    %cst_118 = arith.constant 5.000000e-01 : f32
    %302 = vector.broadcast %cst_118 : f32 to vector<8x32xf32>
    %303 = arith.mulf %302, %301 : vector<8x32xf32>
    %304 = arith.mulf %293, %262 : vector<8x32xf32>
    %305 = arith.mulf %285, %295 : vector<8x32xf32>
    %306 = arith.addf %304, %305 : vector<8x32xf32>
    %307 = math.tanh %306 : vector<8x32xf32>
    %308 = arith.mulf %303, %307 : vector<8x32xf32>
    %cst_119 = arith.constant 0.000000e+00 : f32
    %cst_120 = arith.constant 6.000000e+00 : f32
    %309 = vector.broadcast %cst_119 : f32 to vector<8x32xf32>
    %310 = arith.maximumf %309, %308 : vector<8x32xf32>
    %311 = vector.broadcast %cst_120 : f32 to vector<8x32xf32>
    %312 = arith.minimumf %311, %310 : vector<8x32xf32>
    %313 = arith.index_cast %c6_i32 : i32 to index
    %c0_121 = arith.constant 0 : index
    %c0_122 = arith.constant 0 : index
    %314 = vector.load %arg10[%313, %c0_121, %c0_122] : memref<8x8x32xf32, #tpu.memory_space<vmem>>, vector<1x8x32xf32>
    %315 = vector.shape_cast %314 : vector<1x8x32xf32> to vector<8x32xf32>
    %316 = vector.shape_cast %312 : vector<8x32xf32> to vector<1x8x32xf32>
    tpu.vector_store %arg10[%313, %c0_121, %c0_122], %316 {strides = array<i32>} : memref<8x8x32xf32, #tpu.memory_space<vmem>>, vector<1x8x32xf32>,
    %c7_i32 = arith.constant 7 : i32
    %317 = arith.index_cast %c7_i32 : i32 to index
    %c0_123 = arith.constant 0 : index
    %c0_124 = arith.constant 0 : index
    %318 = vector.load %arg9[%317, %c0_123, %c0_124] : memref<8x8x128xf32, #tpu.memory_space<vmem>>, vector<1x8x128xf32>
    %319 = vector.shape_cast %318 : vector<1x8x128xf32> to vector<8x128xf32>
    %cst_125 = arith.constant dense<0.000000e+00> : vector<8x128xf32>
    %320 = tpu.matmul %308, %6, %cst_125 {dimension_numbers = #tpu.dot_dimension_numbers<[1], [0], [0], [1], [0, 0, 1, 1], [], []>} : vector<8x32xf32>, vector<32x128xf32>, vector<8x128xf32> -> vector<8x128xf32>
    %321 = arith.addf %319, %320 : vector<8x128xf32>
    %322 = vector.extract_strided_slice %321 {offsets = [0, 0], sizes = [8, 32], strides = [1, 1]} : vector<8x128xf32> to vector<8x32xf32>
    %cst_126 = arith.constant 5.000000e-01 : f32
    %323 = vector.broadcast %cst_126 : f32 to vector<8x32xf32>
    %324 = arith.mulf %323, %322 : vector<8x32xf32>
    %325 = math.tanh %324 : vector<8x32xf32>
    %cst_127 = arith.constant 1.000000e+00 : f32
    %326 = vector.broadcast %cst_127 : f32 to vector<8x32xf32>
    %327 = arith.addf %325, %326 : vector<8x32xf32>
    %cst_128 = arith.constant 5.000000e-01 : f32
    %328 = vector.broadcast %cst_128 : f32 to vector<8x32xf32>
    %329 = arith.mulf %328, %327 : vector<8x32xf32>
    %330 = vector.extract_strided_slice %321 {offsets = [0, 32], sizes = [8, 32], strides = [1, 1]} : vector<8x128xf32> to vector<8x32xf32>
    %cst_129 = arith.constant 5.000000e-01 : f32
    %331 = vector.broadcast %cst_129 : f32 to vector<8x32xf32>
    %332 = arith.mulf %331, %330 : vector<8x32xf32>
    %333 = math.tanh %332 : vector<8x32xf32>
    %cst_130 = arith.constant 1.000000e+00 : f32
    %334 = vector.broadcast %cst_130 : f32 to vector<8x32xf32>
    %335 = arith.addf %333, %334 : vector<8x32xf32>
    %cst_131 = arith.constant 5.000000e-01 : f32
    %336 = vector.broadcast %cst_131 : f32 to vector<8x32xf32>
    %337 = arith.mulf %336, %335 : vector<8x32xf32>
    %338 = vector.extract_strided_slice %321 {offsets = [0, 64], sizes = [8, 32], strides = [1, 1]} : vector<8x128xf32> to vector<8x32xf32>
    %339 = math.tanh %338 : vector<8x32xf32>
    %340 = vector.extract_strided_slice %321 {offsets = [0, 96], sizes = [8, 32], strides = [1, 1]} : vector<8x128xf32> to vector<8x32xf32>
    %cst_132 = arith.constant 5.000000e-01 : f32
    %341 = vector.broadcast %cst_132 : f32 to vector<8x32xf32>
    %342 = arith.mulf %341, %340 : vector<8x32xf32>
    %343 = math.tanh %342 : vector<8x32xf32>
    %cst_133 = arith.constant 1.000000e+00 : f32
    %344 = vector.broadcast %cst_133 : f32 to vector<8x32xf32>
    %345 = arith.addf %343, %344 : vector<8x32xf32>
    %cst_134 = arith.constant 5.000000e-01 : f32
    %346 = vector.broadcast %cst_134 : f32 to vector<8x32xf32>
    %347 = arith.mulf %346, %345 : vector<8x32xf32>
    %348 = arith.mulf %337, %306 : vector<8x32xf32>
    %349 = arith.mulf %329, %339 : vector<8x32xf32>
    %350 = arith.addf %348, %349 : vector<8x32xf32>
    %351 = math.tanh %350 : vector<8x32xf32>
    %352 = arith.mulf %347, %351 : vector<8x32xf32>
    %cst_135 = arith.constant 0.000000e+00 : f32
    %cst_136 = arith.constant 6.000000e+00 : f32
    %353 = vector.broadcast %cst_135 : f32 to vector<8x32xf32>
    %354 = arith.maximumf %353, %352 : vector<8x32xf32>
    %355 = vector.broadcast %cst_136 : f32 to vector<8x32xf32>
    %356 = arith.minimumf %355, %354 : vector<8x32xf32>
    %357 = arith.index_cast %c7_i32 : i32 to index
    %c0_137 = arith.constant 0 : index
    %c0_138 = arith.constant 0 : index
    %358 = vector.load %arg10[%357, %c0_137, %c0_138] : memref<8x8x32xf32, #tpu.memory_space<vmem>>, vector<1x8x32xf32>
    %359 = vector.shape_cast %358 : vector<1x8x32xf32> to vector<8x32xf32>
    %360 = vector.shape_cast %356 : vector<8x32xf32> to vector<1x8x32xf32>
    tpu.vector_store %arg10[%357, %c0_137, %c0_138], %360 {strides = array<i32>} : memref<8x8x32xf32, #tpu.memory_space<vmem>>, vector<1x8x32xf32>,
    %c8_i32 = arith.constant 8 : i32
    %c0_139 = arith.constant 0 : index
    %c0_140 = arith.constant 0 : index
    %c0_141 = arith.constant 0 : index
    %361 = vector.load %arg10[%c0_139, %c0_140, %c0_141] : memref<8x8x32xf32, #tpu.memory_space<vmem>>, vector<8x8x32xf32>
    %362 = vector.shape_cast %361 : vector<8x8x32xf32> to vector<64x32xf32>
    %c0_142 = arith.constant 0 : index
    %c0_143 = arith.constant 0 : index
    %363 = vector.load %arg4[%c0_142, %c0_143] : memref<32x128xf32, #tpu.memory_space<vmem>>, vector<32x128xf32>
    %cst_144 = arith.constant dense<0.000000e+00> : vector<64x128xf32>
    %364 = tpu.matmul %362, %363, %cst_144 {dimension_numbers = #tpu.dot_dimension_numbers<[1], [0], [0], [1], [0, 0, 1, 1], [], []>} : vector<64x32xf32>, vector<32x128xf32>, vector<64x128xf32> -> vector<64x128xf32>
    %c0_145 = arith.constant 0 : index
    %c0_146 = arith.constant 0 : index
    %365 = vector.load %arg5[%c0_145, %c0_146] : memref<1x128xf32, #tpu.memory_space<vmem>>, vector<1x128xf32>
    %366 = vector.broadcast %365 : vector<1x128xf32> to vector<64x128xf32>
    %367 = arith.addf %364, %366 : vector<64x128xf32>
    %c0_147 = arith.constant 0 : index
    %c0_148 = arith.constant 0 : index
    %368 = vector.load %arg6[%c0_147, %c0_148] : memref<1x128xf32, #tpu.memory_space<vmem>>, vector<1x128xf32>
    %cst_149 = arith.constant 5.000000e-01 : f32
    %369 = vector.broadcast %cst_149 : f32 to vector<1x128xf32>
    %370 = arith.cmpf ogt, %368, %369 : vector<1x128xf32>
    %cst_150 = arith.constant 0.000000e+00 : f32
    %371 = vector.broadcast %cst_150 : f32 to vector<64x128xf32>
    %372 = arith.cmpf ogt, %367, %371 : vector<64x128xf32>
    %cst_151 = arith.constant 0.000000e+00 : f32
    %373 = vector.broadcast %cst_151 : f32 to vector<64x128xf32>
    %374 = arith.minimumf %367, %373 : vector<64x128xf32>
    %375 = math.exp %374 : vector<64x128xf32>
    %cst_152 = arith.constant 1.000000e+00 : f32
    %376 = vector.broadcast %cst_152 : f32 to vector<64x128xf32>
    %377 = arith.subf %375, %376 : vector<64x128xf32>
    %cst_153 = arith.constant 1.67326319 : f32
    %378 = vector.broadcast %cst_153 : f32 to vector<64x128xf32>
    %379 = arith.mulf %378, %377 : vector<64x128xf32>
    %380 = arith.select %372, %367, %379 : vector<64x128xi1>, vector<64x128xf32>
    %cst_154 = arith.constant 1.05070102 : f32
    %381 = vector.broadcast %cst_154 : f32 to vector<64x128xf32>
    %382 = arith.mulf %381, %380 : vector<64x128xf32>
    %c0_155 = arith.constant 0 : index
    %c0_156 = arith.constant 0 : index
    %383 = vector.load %arg7[%c0_155, %c0_156] : memref<1x128xf32, #tpu.memory_space<vmem>>, vector<1x128xf32>
    %384 = vector.broadcast %383 : vector<1x128xf32> to vector<64x128xf32>
    %385 = arith.addf %382, %384 : vector<64x128xf32>
    %cst_157 = arith.constant 1.000000e-03 : f32
    %386 = vector.broadcast %cst_157 : f32 to vector<64x128xf32>
    %387 = arith.mulf %367, %386 : vector<64x128xf32>
    %388 = vector.shape_cast %370 : vector<1x128xi1> to vector<1x128xi1>
    %389 = vector.broadcast %388 : vector<1x128xi1> to vector<64x128xi1>
    %390 = arith.select %389, %385, %387 : vector<64x128xi1>, vector<64x128xf32>
    %391 = vector.shape_cast %390 : vector<64x128xf32> to vector<8x8x128xf32>
    %c0_158 = arith.constant 0 : index
    %c0_159 = arith.constant 0 : index
    %c0_160 = arith.constant 0 : index
    %392 = vector.load %arg8[%c0_158, %c0_159, %c0_160] : memref<8x8x128xf32, #tpu.memory_space<vmem>>, vector<8x8x128xf32>
    tpu.vector_store %arg8[%c0_158, %c0_159, %c0_160], %391 {strides = array<i32>} : memref<8x8x128xf32, #tpu.memory_space<vmem>>, vector<8x8x128xf32>,
    return
  }
  func.func @transform_0(%arg0: i32) -> (i32, i32, i32) {
    %c0_i32 = arith.constant 0 : i32
    %c0_i32_0 = arith.constant 0 : i32
    %c0_i32_1 = arith.constant 0 : i32
    return %c0_i32, %arg0, %c0_i32_0 : i32, i32, i32
  }
  func.func @transform_1(%arg0: i32) -> (i32, i32) {
    %c0_i32 = arith.constant 0 : i32
    %c0_i32_0 = arith.constant 0 : i32
    %c0_i32_1 = arith.constant 0 : i32
    return %c0_i32, %c0_i32_0 : i32, i32
  }
  func.func @transform_2(%arg0: i32) -> (i32, i32) {
    %c0_i32 = arith.constant 0 : i32
    %c0_i32_0 = arith.constant 0 : i32
    %c0_i32_1 = arith.constant 0 : i32
    return %c0_i32, %c0_i32_0 : i32, i32
  }
  func.func @transform_3(%arg0: i32) -> (i32, i32) {
    %c0_i32 = arith.constant 0 : i32
    %c0_i32_0 = arith.constant 0 : i32
    %c0_i32_1 = arith.constant 0 : i32
    return %c0_i32, %c0_i32_0 : i32, i32
  }
  func.func @transform_4(%arg0: i32) -> (i32, i32) {
    %c0_i32 = arith.constant 0 : i32
    %c0_i32_0 = arith.constant 0 : i32
    %c0_i32_1 = arith.constant 0 : i32
    return %c0_i32, %c0_i32_0 : i32, i32
  }
  func.func @transform_5(%arg0: i32) -> (i32, i32) {
    %c0_i32 = arith.constant 0 : i32
    %c0_i32_0 = arith.constant 0 : i32
    %c0_i32_1 = arith.constant 0 : i32
    return %c0_i32, %c0_i32_0 : i32, i32
  }
  func.func @transform_6(%arg0: i32) -> (i32, i32) {
    %c0_i32 = arith.constant 0 : i32
    %c0_i32_0 = arith.constant 0 : i32
    %c0_i32_1 = arith.constant 0 : i32
    return %c0_i32, %c0_i32_0 : i32, i32
  }
  func.func @transform_7(%arg0: i32) -> (i32, i32, i32) {
    %c0_i32 = arith.constant 0 : i32
    %c0_i32_0 = arith.constant 0 : i32
    %c0_i32_1 = arith.constant 0 : i32
    return %c0_i32, %arg0, %c0_i32_0 : i32, i32, i32
  }
}

</mosaic_0001>

<llo_original>
// kernel: tpu_custom_call.1
$region0: #{tpu_custom_call.1}
  #allocation0 [shape = 'u32[]', space=smem, size = 0x4, offset = 0x4, fixed_abs, tag = 'smem constant byte address 0x4 - core index']
  #allocation1 [shape = 'u32[72,128]{1,0:T(1,128)}', space=vmem, size = 0x9000, scoped, tag = 'internal scratch']
  #allocation2 [shape = 'f32[8,8,128]{2,1,0:T(8,128)}', space=vmem, size = 0x8000, scoped, tag = 'scratch operand']
  #allocation3 [shape = 'f32[8,8,32]{2,1,0:T(8,128)}', space=vmem, size = 0x8000, scoped, tag = 'scratch operand']
  %s0 = inlined_call_operand.vmem [shape: f32[8,8,4], index: 0, kind: input, shape index: {}]
  %s1 = inlined_call_operand.vmem [shape: f32[4,128], index: 1, kind: input, shape index: {}]
  %s2 = inlined_call_operand.vmem [shape: f32[32,128], index: 2, kind: input, shape index: {}]
  %s3 = inlined_call_operand.vmem [shape: f32[32,128], index: 3, kind: input, shape index: {}]
  %s4 = inlined_call_operand.vmem [shape: f32[1,128], index: 4, kind: input, shape index: {}]
  %s5 = inlined_call_operand.vmem [shape: f32[1,128], index: 5, kind: input, shape index: {}]
  %s6 = inlined_call_operand.vmem [shape: f32[1,128], index: 6, kind: input, shape index: {}]
  %s7 = inlined_call_operand.hbm [shape: f32[8,8,128], index: 7, kind: output, shape index: {}]
  %s8 = sld [smem:[#allocation0]]
  $region38: #{tpu_custom_call.1} parent=0
    _
  %s10 = ssub.s32 1, %s8
  %s11 = scalar_select 0, %s10, %s8
  $region1: #{tpu_custom_call.1} parent=0
    #allocation4 [shape = 'u8[32768]{0}', space=vmem, size = 0x8000, scoped, tag = 'output window, operand 0, single buffered']
    #allocation5 [shape = 's32[1]{0}', space=sflag, size = 0x4, scoped, tag = 'scoped memory for tpu_custom_call.1']
    %12 = vsyncpa [#allocation5], 0
    // Predicated region
    $region2: #{tpu_custom_call.1} parent=1 // pred_check
      _
    $region3: #{tpu_custom_call.1} parent=1 // pred_check_branch
      %14 = sbr.rel (0) target = $region5
    $region4: #{tpu_custom_call.1} parent=1 // pred_region
      _
    $region5: #{tpu_custom_call.1} parent=1 // pred_fallthru
      _
    // Predicated region
    $region6: #{tpu_custom_call.1} parent=1 // pred_check
      _
    $region7: #{tpu_custom_call.1} parent=1 // pred_check_branch
      %16 = sbr.rel (0) target = $region9
    $region8: #{tpu_custom_call.1} parent=1 // pred_region
      _
    $region9: #{tpu_custom_call.1} parent=1 // pred_fallthru
      _
    // Predicated region
    $region10: #{tpu_custom_call.1} parent=1 // pred_check
      _
    $region11: #{tpu_custom_call.1} parent=1 // pred_check_branch
      %18 = sbr.rel (0) target = $region13
    $region12: #{tpu_custom_call.1} parent=1 // pred_region
      _
    $region13: #{tpu_custom_call.1} parent=1 // pred_fallthru
      _
    // Predicated region
    $region14: #{tpu_custom_call.1} parent=1 // pred_check
      _
    $region15: #{tpu_custom_call.1} parent=1 // pred_check_branch
      %20 = sbr.rel (0) target = $region17
    $region16: #{tpu_custom_call.1} parent=1 // pred_region
      _
    $region17: #{tpu_custom_call.1} parent=1 // pred_fallthru
      _
    // Predicated region
    $region18: #{tpu_custom_call.1} parent=1 // pred_check
      _
    $region19: #{tpu_custom_call.1} parent=1 // pred_check_branch
      %22 = sbr.rel (0) target = $region21
    $region20: #{tpu_custom_call.1} parent=1 // pred_region
      _
    $region21: #{tpu_custom_call.1} parent=1 // pred_fallthru
      _
    // Predicated region
    $region22: #{tpu_custom_call.1} parent=1 // pred_check
      _
    $region23: #{tpu_custom_call.1} parent=1 // pred_check_branch
      %24 = sbr.rel (0) target = $region25
    $region24: #{tpu_custom_call.1} parent=1 // pred_region
      _
    $region25: #{tpu_custom_call.1} parent=1 // pred_fallthru
      _
    // Predicated region
    $region26: #{tpu_custom_call.1} parent=1 // pred_check
      _
    $region27: #{tpu_custom_call.1} parent=1 // pred_check_branch
      %26 = sbr.rel (0) target = $region29
    $region28: #{tpu_custom_call.1} parent=1 // pred_region
      _
    $region29: #{tpu_custom_call.1} parent=1 // pred_fallthru
      _
    %v27 = vld [vmem:[%s0] sm:$0xff]
    %v28 = vld [vmem:[%s0 + $0x8] sm:$0xff]
    %v29 = vld [vmem:[%s0 + $0x10] sm:$0xff]
    %v30 = vld [vmem:[%s0 + $0x18] sm:$0xff]
    %v31 = vld [vmem:[%s0 + $0x20] sm:$0xff]
    %v32 = vld [vmem:[%s0 + $0x28] sm:$0xff]
    %v33 = vld [vmem:[%s0 + $0x30] sm:$0xff]
    %v34 = vld [vmem:[%s0 + $0x38] sm:$0xff]
    %v35 = vld [vmem:[%s1] sm:$0xf]
    %vm36 = vcmask 31744
    %v38 = vsel %vm36, %v27, 0
    %v41 = vsel %vm36, %v28, 0
    %v44 = vsel %vm36, %v29, 0
    %v47 = vsel %vm36, %v30, 0
    %v50 = vsel %vm36, %v31, 0
    %v53 = vsel %vm36, %v32, 0
    %v56 = vsel %vm36, %v33, 0
    %v59 = vsel %vm36, %v34, 0
    %vm61 = vcmask 1043456
    %v63 = vsel %vm61, %v35, 0
    %65 = vmatpush.msra.mxu0 0.0
    %66 = vmatpush.msra.mxu0 0.0
    %67 = vmatpush.msra.mxu0 0.0
    %68 = vmatpush.msra.mxu0 0.0
    %69 = vmatpush.msra.mxu0 0.0
    %70 = vmatpush.msra.mxu0 0.0
    %71 = vmatpush.msra.mxu0 0.0
    %72 = vmatpush.msra.mxu0 0.0
    %73 = vmatpush.msra.mxu0 0.0
    %74 = vmatpush.msra.mxu0 0.0
    %75 = vmatpush.msra.mxu0 0.0
    %76 = vmatpush.msra.mxu0 0.0
    %77 = vmatpush.msra.mxu0 0.0
    %78 = vmatpush.msra.mxu0 0.0
    %79 = vmatpush.msra.mxu0 0.0
    %80 = vmatpush.msra.mxu0 %v63
    %81 = vmatmul.f32.gmra.mxu0 %v38
    %v82 = vpop.f32.mrf.mxu0
    %v83 = vadd.f32 0.0, %v82
    %84 = vmatmul.f32.gmra.mxu0 %v41
    %v85 = vpop.f32.mrf.mxu0
    %v86 = vadd.f32 0.0, %v85
    %87 = vmatmul.f32.gmra.mxu0 %v44
    %v88 = vpop.f32.mrf.mxu0
    %v89 = vadd.f32 0.0, %v88
    %90 = vmatmul.f32.gmra.mxu0 %v47
    %v91 = vpop.f32.mrf.mxu0
    %v92 = vadd.f32 0.0, %v91
    %93 = vmatmul.f32.gmra.mxu0 %v50
    %v94 = vpop.f32.mrf.mxu0
    %v95 = vadd.f32 0.0, %v94
    %96 = vmatmul.f32.gmra.mxu0 %v53
    %v97 = vpop.f32.mrf.mxu0
    %v98 = vadd.f32 0.0, %v97
    %99 = vmatmul.f32.gmra.mxu0 %v56
    %v100 = vpop.f32.mrf.mxu0
    %v101 = vadd.f32 0.0, %v100
    %102 = vmatmul.f32.gmra.mxu0 %v59
    %v103 = vpop.f32.mrf.mxu0
    %v104 = vadd.f32 0.0, %v103
    %105 = vdwg.mxu0
    %106 = vst [vmem:[#allocation2] sm:$0xff] %v83
    %107 = vst [vmem:[#allocation2 + $0x8] sm:$0xff] %v86
    %108 = vst [vmem:[#allocation2 + $0x10] sm:$0xff] %v89
    %109 = vst [vmem:[#allocation2 + $0x18] sm:$0xff] %v92
    %110 = vst [vmem:[#allocation2 + $0x20] sm:$0xff] %v95
    %111 = vst [vmem:[#allocation2 + $0x28] sm:$0xff] %v98
    %112 = vst [vmem:[#allocation2 + $0x30] sm:$0xff] %v101
    %113 = vst [vmem:[#allocation2 + $0x38] sm:$0xff] %v104
    %v114 = vld [vmem:[%s2] sm:$0xff]
    %v115 = vld [vmem:[%s2 + $0x8] sm:$0xff]
    %v116 = vld [vmem:[%s2 + $0x10] sm:$0xff]
    %v117 = vld [vmem:[%s2 + $0x18] sm:$0xff]
    %v118 = vld [vmem:[#allocation2] sm:$0xff]
    %vm119 = vcmask 261120
    %v121 = vsel %vm119, 0.0, 0
    %123 = vmatpush.msra.mxu0 0.0
    %124 = vmatpush.msra.mxu0 0.0
    %125 = vmatpush.msra.mxu0 0.0
    %126 = vmatpush.msra.mxu0 0.0
    %127 = vmatpush.msra.mxu0 0.0
    %128 = vmatpush.msra.mxu0 0.0
    %129 = vmatpush.msra.mxu0 0.0
    %130 = vmatpush.msra.mxu0 0.0
    %131 = vmatpush.msra.mxu0 0.0
    %132 = vmatpush.msra.mxu0 0.0
    %133 = vmatpush.msra.mxu0 0.0
    %134 = vmatpush.msra.mxu0 0.0
    %135 = vmatpush.msra.mxu0 %v117
    %136 = vmatpush.msra.mxu0 %v116
    %137 = vmatpush.msra.mxu0 %v115
    %138 = vmatpush.msra.mxu0 %v114
    %139 = vmatmul.f32.gmra.mxu0 %v121
    %v140 = vpop.f32.mrf.mxu0
    %v141 = vadd.f32 0.0, %v140
    %142 = vdwg.mxu0
    %v143 = vadd.f32 %v118, %v141
    %v144 = vmul.f32 %v143, 0.5
    %v145 = vtanh.pop %v144
    %v146 = vadd.f32 %v145, 1.0
    %v147 = vmul.f32 %v146, 0.5
    %v148 = vtanh.pop %v143
    %v149 = vmul.f32 %v147, 0.0
    %151 = vrot.lane.b32.xlu0 %v148, 64
    %v152 = vpop.permute.xlu0 %151
    %v154 = vmul.f32 %v147, %v152
    %156 = vrot.lane.b32.xlu0 %v154, 32
    %v157 = vpop.permute.xlu0 %156
    %v159 = vadd.f32 %v149, %v157
    %v160 = vtanh.pop %v159
    %162 = vrot.lane.b32.xlu0 %v160, 64
    %v163 = vpop.permute.xlu0 %162
    %v165 = vmul.f32 %v147, %v163
    %v166 = vmax.f32 %v165, 0.0
    %v167 = vmin.f32 %v166, 6.0
    %169 = vrot.lane.b32.xlu0 %v167, 32
    %v170 = vpop.permute.xlu0 %169
    %172 = vst.msk [vmem:[#allocation3] sm:$0xff] %vm119, %v170
    %s173 = scalar_lea.vmem [#allocation2], 8
    %v174 = vld [vmem:[%s173] sm:$0xff]
    %176 = vrot.lane.b32.xlu0 %v165, 32
    %v177 = vpop.permute.xlu0 %176
    %v178 = vsel %vm119, %v177, 0
    %180 = vmatpush.msra.mxu0 0.0
    %181 = vmatpush.msra.mxu0 0.0
    %182 = vmatpush.msra.mxu0 0.0
    %183 = vmatpush.msra.mxu0 0.0
    %184 = vmatpush.msra.mxu0 0.0
    %185 = vmatpush.msra.mxu0 0.0
    %186 = vmatpush.msra.mxu0 0.0
    %187 = vmatpush.msra.mxu0 0.0
    %188 = vmatpush.msra.mxu0 0.0
    %189 = vmatpush.msra.mxu0 0.0
    %190 = vmatpush.msra.mxu0 0.0
    %191 = vmatpush.msra.mxu0 0.0
    %192 = vmatpush.msra.mxu0 %v117
    %193 = vmatpush.msra.mxu0 %v116
    %194 = vmatpush.msra.mxu0 %v115
    %195 = vmatpush.msra.mxu0 %v114
    %196 = vmatmul.f32.gmra.mxu0 %v178
    %v197 = vpop.f32.mrf.mxu0
    %v198 = vadd.f32 0.0, %v197
    %199 = vdwg.mxu0
    %v200 = vadd.f32 %v174, %v198
    %v201 = vmul.f32 %v200, 0.5
    %v202 = vtanh.pop %v201
    %v203 = vadd.f32 %v202, 1.0
    %v204 = vmul.f32 %v203, 0.5
    %v205 = vtanh.pop %v200
    %v206 = vmul.f32 %v204, %v159
    %208 = vrot.lane.b32.xlu0 %v205, 64
    %v209 = vpop.permute.xlu0 %208
    %v211 = vmul.f32 %v204, %v209
    %213 = vrot.lane.b32.xlu0 %v211, 32
    %v214 = vpop.permute.xlu0 %213
    %v216 = vadd.f32 %v206, %v214
    %v217 = vtanh.pop %v216
    %219 = vrot.lane.b32.xlu0 %v217, 64
    %v220 = vpop.permute.xlu0 %219
    %v222 = vmul.f32 %v204, %v220
    %v223 = vmax.f32 %v222, 0.0
    %v224 = vmin.f32 %v223, 6.0
    %226 = vrot.lane.b32.xlu0 %v224, 32
    %v227 = vpop.permute.xlu0 %226
    %s229 = scalar_lea.vmem [#allocation3], 8
    %230 = vst.msk [vmem:[%s229] sm:$0xff] %vm119, %v227
    %s231 = scalar_lea.vmem [#allocation2], 16
    %v232 = vld [vmem:[%s231] sm:$0xff]
    %234 = vrot.lane.b32.xlu0 %v222, 32
    %v235 = vpop.permute.xlu0 %234
    %v236 = vsel %vm119, %v235, 0
    %238 = vmatpush.msra.mxu0 0.0
    %239 = vmatpush.msra.mxu0 0.0
    %240 = vmatpush.msra.mxu0 0.0
    %241 = vmatpush.msra.mxu0 0.0
    %242 = vmatpush.msra.mxu0 0.0
    %243 = vmatpush.msra.mxu0 0.0
    %244 = vmatpush.msra.mxu0 0.0
    %245 = vmatpush.msra.mxu0 0.0
    %246 = vmatpush.msra.mxu0 0.0
    %247 = vmatpush.msra.mxu0 0.0
    %248 = vmatpush.msra.mxu0 0.0
    %249 = vmatpush.msra.mxu0 0.0
    %250 = vmatpush.msra.mxu0 %v117
    %251 = vmatpush.msra.mxu0 %v116
    %252 = vmatpush.msra.mxu0 %v115
    %253 = vmatpush.msra.mxu0 %v114
    %254 = vmatmul.f32.gmra.mxu0 %v236
    %v255 = vpop.f32.mrf.mxu0
    %v256 = vadd.f32 0.0, %v255
    %257 = vdwg.mxu0
    %v258 = vadd.f32 %v232, %v256
    %v259 = vmul.f32 %v258, 0.5
    %v260 = vtanh.pop %v259
    %v261 = vadd.f32 %v260, 1.0
    %v262 = vmul.f32 %v261, 0.5
    %v263 = vtanh.pop %v258
    %v264 = vmul.f32 %v262, %v216
    %266 = vrot.lane.b32.xlu0 %v263, 64
    %v267 = vpop.permute.xlu0 %266
    %v269 = vmul.f32 %v262, %v267
    %271 = vrot.lane.b32.xlu0 %v269, 32
    %v272 = vpop.permute.xlu0 %271
    %v274 = vadd.f32 %v264, %v272
    %v275 = vtanh.pop %v274
    %277 = vrot.lane.b32.xlu0 %v275, 64
    %v278 = vpop.permute.xlu0 %277
    %v280 = vmul.f32 %v262, %v278
    %v281 = vmax.f32 %v280, 0.0
    %v282 = vmin.f32 %v281, 6.0
    %284 = vrot.lane.b32.xlu0 %v282, 32
    %v285 = vpop.permute.xlu0 %284
    %s287 = scalar_lea.vmem [#allocation3], 16
    %288 = vst.msk [vmem:[%s287] sm:$0xff] %vm119, %v285
    %s289 = scalar_lea.vmem [#allocation2], 24
    %v290 = vld [vmem:[%s289] sm:$0xff]
    %292 = vrot.lane.b32.xlu0 %v280, 32
    %v293 = vpop.permute.xlu0 %292
    %v294 = vsel %vm119, %v293, 0
    %296 = vmatpush.msra.mxu0 0.0
    %297 = vmatpush.msra.mxu0 0.0
    %298 = vmatpush.msra.mxu0 0.0
    %299 = vmatpush.msra.mxu0 0.0
    %300 = vmatpush.msra.mxu0 0.0
    %301 = vmatpush.msra.mxu0 0.0
    %302 = vmatpush.msra.mxu0 0.0
    %303 = vmatpush.msra.mxu0 0.0
    %304 = vmatpush.msra.mxu0 0.0
    %305 = vmatpush.msra.mxu0 0.0
    %306 = vmatpush.msra.mxu0 0.0
    %307 = vmatpush.msra.mxu0 0.0
    %308 = vmatpush.msra.mxu0 %v117
    %309 = vmatpush.msra.mxu0 %v116
    %310 = vmatpush.msra.mxu0 %v115
    %311 = vmatpush.msra.mxu0 %v114
    %312 = vmatmul.f32.gmra.mxu0 %v294
    %v313 = vpop.f32.mrf.mxu0
    %v314 = vadd.f32 0.0, %v313
    %315 = vdwg.mxu0
    %v316 = vadd.f32 %v290, %v314
    %v317 = vmul.f32 %v316, 0.5
    %v318 = vtanh.pop %v317
    %v319 = vadd.f32 %v318, 1.0
    %v320 = vmul.f32 %v319, 0.5
    %v321 = vtanh.pop %v316
    %v322 = vmul.f32 %v320, %v274
    %324 = vrot.lane.b32.xlu0 %v321, 64
    %v325 = vpop.permute.xlu0 %324
    %v327 = vmul.f32 %v320, %v325
    %329 = vrot.lane.b32.xlu0 %v327, 32
    %v330 = vpop.permute.xlu0 %329
    %v332 = vadd.f32 %v322, %v330
    %v333 = vtanh.pop %v332
    %335 = vrot.lane.b32.xlu0 %v333, 64
    %v336 = vpop.permute.xlu0 %335
    %v338 = vmul.f32 %v320, %v336
    %v339 = vmax.f32 %v338, 0.0
    %v340 = vmin.f32 %v339, 6.0
    %342 = vrot.lane.b32.xlu0 %v340, 32
    %v343 = vpop.permute.xlu0 %342
    %s345 = scalar_lea.vmem [#allocation3], 24
    %346 = vst.msk [vmem:[%s345] sm:$0xff] %vm119, %v343
    %s347 = scalar_lea.vmem [#allocation2], 32
    %v348 = vld [vmem:[%s347] sm:$0xff]
    %350 = vrot.lane.b32.xlu0 %v338, 32
    %v351 = vpop.permute.xlu0 %350
    %v352 = vsel %vm119, %v351, 0
    %354 = vmatpush.msra.mxu0 0.0
    %355 = vmatpush.msra.mxu0 0.0
    %356 = vmatpush.msra.mxu0 0.0
    %357 = vmatpush.msra.mxu0 0.0
    %358 = vmatpush.msra.mxu0 0.0
    %359 = vmatpush.msra.mxu0 0.0
    %360 = vmatpush.msra.mxu0 0.0
    %361 = vmatpush.msra.mxu0 0.0
    %362 = vmatpush.msra.mxu0 0.0
    %363 = vmatpush.msra.mxu0 0.0
    %364 = vmatpush.msra.mxu0 0.0
    %365 = vmatpush.msra.mxu0 0.0
    %366 = vmatpush.msra.mxu0 %v117
    %367 = vmatpush.msra.mxu0 %v116
    %368 = vmatpush.msra.mxu0 %v115
    %369 = vmatpush.msra.mxu0 %v114
    %370 = vmatmul.f32.gmra.mxu0 %v352
    %v371 = vpop.f32.mrf.mxu0
    %v372 = vadd.f32 0.0, %v371
    %373 = vdwg.mxu0
    %v374 = vadd.f32 %v348, %v372
    %v375 = vmul.f32 %v374, 0.5
    %v376 = vtanh.pop %v375
    %v377 = vadd.f32 %v376, 1.0
    %v378 = vmul.f32 %v377, 0.5
    %v379 = vtanh.pop %v374
    %v380 = vmul.f32 %v378, %v332
    %382 = vrot.lane.b32.xlu0 %v379, 64
    %v383 = vpop.permute.xlu0 %382
    %v385 = vmul.f32 %v378, %v383
    %387 = vrot.lane.b32.xlu0 %v385, 32
    %v388 = vpop.permute.xlu0 %387
    %v390 = vadd.f32 %v380, %v388
    %v391 = vtanh.pop %v390
    %393 = vrot.lane.b32.xlu0 %v391, 64
    %v394 = vpop.permute.xlu0 %393
    %v396 = vmul.f32 %v378, %v394
    %v397 = vmax.f32 %v396, 0.0
    %v398 = vmin.f32 %v397, 6.0
    %400 = vrot.lane.b32.xlu0 %v398, 32
    %v401 = vpop.permute.xlu0 %400
    %s403 = scalar_lea.vmem [#allocation3], 32
    %404 = vst.msk [vmem:[%s403] sm:$0xff] %vm119, %v401
    %s405 = scalar_lea.vmem [#allocation2], 40
    %v406 = vld [vmem:[%s405] sm:$0xff]
    %408 = vrot.lane.b32.xlu0 %v396, 32
    %v409 = vpop.permute.xlu0 %408
    %v410 = vsel %vm119, %v409, 0
    %412 = vmatpush.msra.mxu0 0.0
    %413 = vmatpush.msra.mxu0 0.0
    %414 = vmatpush.msra.mxu0 0.0
    %415 = vmatpush.msra.mxu0 0.0
    %416 = vmatpush.msra.mxu0 0.0
    %417 = vmatpush.msra.mxu0 0.0
    %418 = vmatpush.msra.mxu0 0.0
    %419 = vmatpush.msra.mxu0 0.0
    %420 = vmatpush.msra.mxu0 0.0
    %421 = vmatpush.msra.mxu0 0.0
    %422 = vmatpush.msra.mxu0 0.0
    %423 = vmatpush.msra.mxu0 0.0
    %424 = vmatpush.msra.mxu0 %v117
    %425 = vmatpush.msra.mxu0 %v116
    %426 = vmatpush.msra.mxu0 %v115
    %427 = vmatpush.msra.mxu0 %v114
    %428 = vmatmul.f32.gmra.mxu0 %v410
    %v429 = vpop.f32.mrf.mxu0
    %v430 = vadd.f32 0.0, %v429
    %431 = vdwg.mxu0
    %v432 = vadd.f32 %v406, %v430
    %v433 = vmul.f32 %v432, 0.5
    %v434 = vtanh.pop %v433
    %v435 = vadd.f32 %v434, 1.0
    %v436 = vmul.f32 %v435, 0.5
    %v437 = vtanh.pop %v432
    %v438 = vmul.f32 %v436, %v390
    %440 = vrot.lane.b32.xlu0 %v437, 64
    %v441 = vpop.permute.xlu0 %440
    %v443 = vmul.f32 %v436, %v441
    %445 = vrot.lane.b32.xlu0 %v443, 32
    %v446 = vpop.permute.xlu0 %445
    %v448 = vadd.f32 %v438, %v446
    %v449 = vtanh.pop %v448
    %451 = vrot.lane.b32.xlu0 %v449, 64
    %v452 = vpop.permute.xlu0 %451
    %v454 = vmul.f32 %v436, %v452
    %v455 = vmax.f32 %v454, 0.0
    %v456 = vmin.f32 %v455, 6.0
    %458 = vrot.lane.b32.xlu0 %v456, 32
    %v459 = vpop.permute.xlu0 %458
    %s461 = scalar_lea.vmem [#allocation3], 40
    %462 = vst.msk [vmem:[%s461] sm:$0xff] %vm119, %v459
    %s463 = scalar_lea.vmem [#allocation2], 48
    %v464 = vld [vmem:[%s463] sm:$0xff]
    %466 = vrot.lane.b32.xlu0 %v454, 32
    %v467 = vpop.permute.xlu0 %466
    %v468 = vsel %vm119, %v467, 0
    %470 = vmatpush.msra.mxu0 0.0
    %471 = vmatpush.msra.mxu0 0.0
    %472 = vmatpush.msra.mxu0 0.0
    %473 = vmatpush.msra.mxu0 0.0
    %474 = vmatpush.msra.mxu0 0.0
    %475 = vmatpush.msra.mxu0 0.0
    %476 = vmatpush.msra.mxu0 0.0
    %477 = vmatpush.msra.mxu0 0.0
    %478 = vmatpush.msra.mxu0 0.0
    %479 = vmatpush.msra.mxu0 0.0
    %480 = vmatpush.msra.mxu0 0.0
    %481 = vmatpush.msra.mxu0 0.0
    %482 = vmatpush.msra.mxu0 %v117
    %483 = vmatpush.msra.mxu0 %v116
    %484 = vmatpush.msra.mxu0 %v115
    %485 = vmatpush.msra.mxu0 %v114
    %486 = vmatmul.f32.gmra.mxu0 %v468
    %v487 = vpop.f32.mrf.mxu0
    %v488 = vadd.f32 0.0, %v487
    %489 = vdwg.mxu0
    %v490 = vadd.f32 %v464, %v488
    %v491 = vmul.f32 %v490, 0.5
    %v492 = vtanh.pop %v491
    %v493 = vadd.f32 %v492, 1.0
    %v494 = vmul.f32 %v493, 0.5
    %v495 = vtanh.pop %v490
    %v496 = vmul.f32 %v494, %v448
    %498 = vrot.lane.b32.xlu0 %v495, 64
    %v499 = vpop.permute.xlu0 %498
    %v501 = vmul.f32 %v494, %v499
    %503 = vrot.lane.b32.xlu0 %v501, 32
    %v504 = vpop.permute.xlu0 %503
    %v506 = vadd.f32 %v496, %v504
    %v507 = vtanh.pop %v506
    %509 = vrot.lane.b32.xlu0 %v507, 64
    %v510 = vpop.permute.xlu0 %509
    %v512 = vmul.f32 %v494, %v510
    %v513 = vmax.f32 %v512, 0.0
    %v514 = vmin.f32 %v513, 6.0
    %516 = vrot.lane.b32.xlu0 %v514, 32
    %v517 = vpop.permute.xlu0 %516
    %s519 = scalar_lea.vmem [#allocation3], 48
    %520 = vst.msk [vmem:[%s519] sm:$0xff] %vm119, %v517
    %s521 = scalar_lea.vmem [#allocation2], 56
    %v522 = vld [vmem:[%s521] sm:$0xff]
    %524 = vrot.lane.b32.xlu0 %v512, 32
    %v525 = vpop.permute.xlu0 %524
    %v526 = vsel %vm119, %v525, 0
    %528 = vmatpush.msra.mxu0 0.0
    %529 = vmatpush.msra.mxu0 0.0
    %530 = vmatpush.msra.mxu0 0.0
    %531 = vmatpush.msra.mxu0 0.0
    %532 = vmatpush.msra.mxu0 0.0
    %533 = vmatpush.msra.mxu0 0.0
    %534 = vmatpush.msra.mxu0 0.0
    %535 = vmatpush.msra.mxu0 0.0
    %536 = vmatpush.msra.mxu0 0.0
    %537 = vmatpush.msra.mxu0 0.0
    %538 = vmatpush.msra.mxu0 0.0
    %539 = vmatpush.msra.mxu0 0.0
    %540 = vmatpush.msra.mxu0 %v117
    %541 = vmatpush.msra.mxu0 %v116
    %542 = vmatpush.msra.mxu0 %v115
    %543 = vmatpush.msra.mxu0 %v114
    %544 = vmatmul.f32.gmra.mxu0 %v526
    %v545 = vpop.f32.mrf.mxu0
    %v546 = vadd.f32 0.0, %v545
    %547 = vdwg.mxu0
    %v548 = vadd.f32 %v522, %v546
    %v549 = vmul.f32 %v548, 0.5
    %v550 = vtanh.pop %v549
    %v551 = vadd.f32 %v550, 1.0
    %v552 = vmul.f32 %v551, 0.5
    %v553 = vtanh.pop %v548
    %v554 = vmul.f32 %v552, %v506
    %556 = vrot.lane.b32.xlu0 %v553, 64
    %v557 = vpop.permute.xlu0 %556
    %v559 = vmul.f32 %v552, %v557
    %561 = vrot.lane.b32.xlu0 %v559, 32
    %v562 = vpop.permute.xlu0 %561
    %v564 = vadd.f32 %v554, %v562
    %v565 = vtanh.pop %v564
    %567 = vrot.lane.b32.xlu0 %v565, 64
    %v568 = vpop.permute.xlu0 %567
    %v570 = vmul.f32 %v552, %v568
    %v571 = vmax.f32 %v570, 0.0
    %v572 = vmin.f32 %v571, 6.0
    %574 = vrot.lane.b32.xlu0 %v572, 32
    %v575 = vpop.permute.xlu0 %574
    %s577 = scalar_lea.vmem [#allocation3], 56
    %578 = vst.msk [vmem:[%s577] sm:$0xff] %vm119, %v575
    %v579 = vld [vmem:[#allocation3] sm:$0xff]
    %v580 = vld [vmem:[#allocation3 + $0x8] sm:$0xff]
    %v581 = vld [vmem:[#allocation3 + $0x10] sm:$0xff]
    %v582 = vld [vmem:[#allocation3 + $0x18] sm:$0xff]
    %v583 = vld [vmem:[#allocation3 + $0x20] sm:$0xff]
    %v584 = vld [vmem:[#allocation3 + $0x28] sm:$0xff]
    %v585 = vld [vmem:[#allocation3 + $0x30] sm:$0xff]
    %v586 = vld [vmem:[#allocation3 + $0x38] sm:$0xff]
    %v587 = vld [vmem:[%s3] sm:$0xff]
    %v588 = vld [vmem:[%s3 + $0x8] sm:$0xff]
    %v589 = vld [vmem:[%s3 + $0x10] sm:$0xff]
    %v590 = vld [vmem:[%s3 + $0x18] sm:$0xff]
    %v591 = vld [vmem:[%s4] sm:$0x1]
    %v593 = vperm.slane %v591, 0
    %v596 = vsel %vm119, %v579, 0
    %v599 = vsel %vm119, %v580, 0
    %v602 = vsel %vm119, %v581, 0
    %v605 = vsel %vm119, %v582, 0
    %v608 = vsel %vm119, %v583, 0
    %v611 = vsel %vm119, %v584, 0
    %v614 = vsel %vm119, %v585, 0
    %v617 = vsel %vm119, %v586, 0
    %619 = vmatpush.msra.mxu0 0.0
    %620 = vmatpush.msra.mxu0 0.0
    %621 = vmatpush.msra.mxu0 0.0
    %622 = vmatpush.msra.mxu0 0.0
    %623 = vmatpush.msra.mxu0 0.0
    %624 = vmatpush.msra.mxu0 0.0
    %625 = vmatpush.msra.mxu0 0.0
    %626 = vmatpush.msra.mxu0 0.0
    %627 = vmatpush.msra.mxu0 0.0
    %628 = vmatpush.msra.mxu0 0.0
    %629 = vmatpush.msra.mxu0 0.0
    %630 = vmatpush.msra.mxu0 0.0
    %631 = vmatpush.msra.mxu0 %v590
    %632 = vmatpush.msra.mxu0 %v589
    %633 = vmatpush.msra.mxu0 %v588
    %634 = vmatpush.msra.mxu0 %v587
    %635 = vmatmul.f32.gmra.mxu0 %v596
    %v636 = vpop.f32.mrf.mxu0
    %v637 = vadd.f32 %v593, %v636
    %638 = vmatmul.f32.gmra.mxu0 %v599
    %v639 = vpop.f32.mrf.mxu0
    %v640 = vadd.f32 %v593, %v639
    %641 = vmatmul.f32.gmra.mxu0 %v602
    %v642 = vpop.f32.mrf.mxu0
    %v643 = vadd.f32 %v593, %v642
    %644 = vmatmul.f32.gmra.mxu0 %v605
    %v645 = vpop.f32.mrf.mxu0
    %v646 = vadd.f32 %v593, %v645
    %647 = vmatmul.f32.gmra.mxu0 %v608
    %v648 = vpop.f32.mrf.mxu0
    %v649 = vadd.f32 %v593, %v648
    %650 = vmatmul.f32.gmra.mxu0 %v611
    %v651 = vpop.f32.mrf.mxu0
    %v652 = vadd.f32 %v593, %v651
    %653 = vmatmul.f32.gmra.mxu0 %v614
    %v654 = vpop.f32.mrf.mxu0
    %v655 = vadd.f32 %v593, %v654
    %656 = vmatmul.f32.gmra.mxu0 %v617
    %v657 = vpop.f32.mrf.mxu0
    %v658 = vadd.f32 %v593, %v657
    %659 = vdwg.mxu0
    %v660 = vld [vmem:[%s5] sm:$0x1]
    %vm661 = vcmp.gt.f32.partialorder %v660, 0.5
    %vm662 = vcmp.gt.f32.partialorder %v637, 0.0
    %vm663 = vcmp.gt.f32.partialorder %v640, 0.0
    %vm664 = vcmp.gt.f32.partialorder %v643, 0.0
    %vm665 = vcmp.gt.f32.partialorder %v646, 0.0
    %vm666 = vcmp.gt.f32.partialorder %v649, 0.0
    %vm667 = vcmp.gt.f32.partialorder %v652, 0.0
    %vm668 = vcmp.gt.f32.partialorder %v655, 0.0
    %vm669 = vcmp.gt.f32.partialorder %v658, 0.0
    %v670 = vmin.f32 %v637, 0.0
    %v671 = vmin.f32 %v640, 0.0
    %v672 = vmin.f32 %v643, 0.0
    %v673 = vmin.f32 %v646, 0.0
    %v674 = vmin.f32 %v649, 0.0
    %v675 = vmin.f32 %v652, 0.0
    %v676 = vmin.f32 %v655, 0.0
    %v677 = vmin.f32 %v658, 0.0
    %v678 = vmul.f32 %v670, 1.442695
    %v679 = vpow.pop %v678
    %v680 = vmul.f32 %v671, 1.442695
    %v681 = vpow.pop %v680
    %v682 = vmul.f32 %v672, 1.442695
    %v683 = vpow.pop %v682
    %v684 = vmul.f32 %v673, 1.442695
    %v685 = vpow.pop %v684
    %v686 = vmul.f32 %v674, 1.442695
    %v687 = vpow.pop %v686
    %v688 = vmul.f32 %v675, 1.442695
    %v689 = vpow.pop %v688
    %v690 = vmul.f32 %v676, 1.442695
    %v691 = vpow.pop %v690
    %v692 = vmul.f32 %v677, 1.442695
    %v693 = vpow.pop %v692
    %v694 = vsub.f32 %v679, 1.0
    %v695 = vsub.f32 %v681, 1.0
    %v696 = vsub.f32 %v683, 1.0
    %v697 = vsub.f32 %v685, 1.0
    %v698 = vsub.f32 %v687, 1.0
    %v699 = vsub.f32 %v689, 1.0
    %v700 = vsub.f32 %v691, 1.0
    %v701 = vsub.f32 %v693, 1.0
    %v702 = vmul.f32 %v694, 1.6732632
    %v703 = vmul.f32 %v695, 1.6732632
    %v704 = vmul.f32 %v696, 1.6732632
    %v705 = vmul.f32 %v697, 1.6732632
    %v706 = vmul.f32 %v698, 1.6732632
    %v707 = vmul.f32 %v699, 1.6732632
    %v708 = vmul.f32 %v700, 1.6732632
    %v709 = vmul.f32 %v701, 1.6732632
    %v710 = vsel %vm662, %v637, %v702
    %v711 = vsel %vm663, %v640, %v703
    %v712 = vsel %vm664, %v643, %v704
    %v713 = vsel %vm665, %v646, %v705
    %v714 = vsel %vm666, %v649, %v706
    %v715 = vsel %vm667, %v652, %v707
    %v716 = vsel %vm668, %v655, %v708
    %v717 = vsel %vm669, %v658, %v709
    %v718 = vmul.f32 %v710, 1.050701
    %v719 = vmul.f32 %v711, 1.050701
    %v720 = vmul.f32 %v712, 1.050701
    %v721 = vmul.f32 %v713, 1.050701
    %v722 = vmul.f32 %v714, 1.050701
    %v723 = vmul.f32 %v715, 1.050701
    %v724 = vmul.f32 %v716, 1.050701
    %v725 = vmul.f32 %v717, 1.050701
    %v726 = vld [vmem:[%s6] sm:$0x1]
    %v728 = vperm.slane %v726, 0
    %v730 = vadd.f32 %v718, %v728
    %v731 = vadd.f32 %v719, %v728
    %v732 = vadd.f32 %v720, %v728
    %v733 = vadd.f32 %v721, %v728
    %v734 = vadd.f32 %v722, %v728
    %v735 = vadd.f32 %v723, %v728
    %v736 = vadd.f32 %v724, %v728
    %v737 = vadd.f32 %v725, %v728
    %v738 = vmul.f32 %v637, 0.001
    %v739 = vmul.f32 %v640, 0.001
    %v740 = vmul.f32 %v643, 0.001
    %v741 = vmul.f32 %v646, 0.001
    %v742 = vmul.f32 %v649, 0.001
    %v743 = vmul.f32 %v652, 0.001
    %v744 = vmul.f32 %v655, 0.001
    %v745 = vmul.f32 %v658, 0.001
    %v746 = vsel %vm661, 1, 0
    %v747 = vperm.slane %v746, 0
    %vm748 = vcmp.eq.s32.totalorder %v747, 1
    %v749 = vsel %vm748, %v730, %v738
    %v750 = vsel %vm748, %v731, %v739
    %v751 = vsel %vm748, %v732, %v740
    %v752 = vsel %vm748, %v733, %v741
    %v753 = vsel %vm748, %v734, %v742
    %v754 = vsel %vm748, %v735, %v743
    %v755 = vsel %vm748, %v736, %v744
    %v756 = vsel %vm748, %v737, %v745
    %757 = vst [vmem:[#allocation4] sm:$0xff] %v749
    %758 = vst [vmem:[#allocation4 + $0x8] sm:$0xff] %v750
    %759 = vst [vmem:[#allocation4 + $0x10] sm:$0xff] %v751
    %760 = vst [vmem:[#allocation4 + $0x18] sm:$0xff] %v752
    %761 = vst [vmem:[#allocation4 + $0x20] sm:$0xff] %v753
    %762 = vst [vmem:[#allocation4 + $0x28] sm:$0xff] %v754
    %763 = vst [vmem:[#allocation4 + $0x30] sm:$0xff] %v755
    %764 = vst [vmem:[#allocation4 + $0x38] sm:$0xff] %v756
    // Predicated region
    $region30: #{tpu_custom_call.1} parent=1 // pred_check
      _
    $region31: #{tpu_custom_call.1} parent=1 // pred_check_branch
      %766 = sbr.rel (0) target = $region33
    $region32: #{tpu_custom_call.1} parent=1 // pred_region
      %768 = vsyncadd [#allocation5], 0
      %s769 = sshll.u32 [#allocation4], 4
      %s770 = int_to_ptr.vmem [resolvable:$true] %s769
      %s771 = sshll.u32 %s7, 4
      %s772 = int_to_ptr.hbm [resolvable:$true] %s771
      %777 = dma.vmem_to_hbm [thread:$0]  %s770, 1024, %s772, [#allocation5], 128, 128, 8
    $region33: #{tpu_custom_call.1} parent=1 // pred_fallthru
      _
    // Predicated region
    $region34: #{tpu_custom_call.1} parent=1 // pred_check
      _
    $region35: #{tpu_custom_call.1} parent=1 // pred_check_branch
      %779 = sbr.rel (0) target = $region37
    $region36: #{tpu_custom_call.1} parent=1 // pred_region
      %781 = dma.done [#allocation5], 1024
    $region37: #{tpu_custom_call.1} parent=1 // pred_fallthru
      _
    %782 = vsyncpa [#allocation5], 1

</llo_original>
